<compile_context>
chip_gen: v7x
topology: tpu7x:2x2x1
jax: 0.10.0
libtpu: 0.0.40
codegen_flags: <defaults>
</compile_context>

<pallas_src>
import functools
import math

import jax
import jax.numpy as jnp
from jax.experimental import pallas as pl
from jax.experimental.pallas import tpu as pltpu


def _round_down(x, m):
    return (x // m) * m


def _pick_tile(dim, target, aligns):
    """Largest tile <= target dividing dim, preferring coarser alignments."""
    if dim <= target:
        return dim
    for align in aligns:
        t = _round_down(target, align)
        while t >= align:
            if dim % t == 0:
                return t
            t -= align
    return dim


@functools.lru_cache(maxsize=1)
def _hw_config():
    """(vmem_limit_bytes, tm_target, tn_target, tk_target), per chip generation."""
    vmem_limit = 48 * 1024 * 1024            # safe under v7x's 64 MiB VMEM
    tm_t, tn_t, tk_t = 256, 512, 512
    try:
        info = pltpu.get_tpu_info()
        cap = getattr(info, "vmem_capacity_bytes", None)
        if cap is not None and cap >= 100 * 1024 * 1024:   # v5e / v6e: 128 MiB
            vmem_limit = 96 * 1024 * 1024
            tm_t, tn_t, tk_t = 512, 1024, 512
    except Exception:                         # fall back to conservative defaults
        pass
    return vmem_limit, tm_t, tn_t, tk_t


# --------------------------- fused GEMM kernel ------------------------------
# [optional LayerNorm prologue, cached per row tile] -> bf16 matmul (f32 acc)
# -> [+bias, optional GELU, optional residual] epilogue.

def _fused_linear_kernel(*refs, eps, activation, has_ln, has_residual):
    it = iter(refs)
    x_ref = next(it)
    if has_ln:
        g_ref = next(it)
        bta_ref = next(it)
    w_ref = next(it)
    b_ref = next(it)
    if has_residual:
        res_ref = next(it)
    o_ref = next(it)
    acc_ref = next(it)
    xln_ref = next(it) if has_ln else None

    j = pl.program_id(1)
    k = pl.program_id(2)

    @pl.when(k == 0)
    def _init():
        acc_ref[...] = jnp.zeros_like(acc_ref)

    if has_ln:
        # LN statistics in f32 (v5e has no bf16 VPU/EUP paths), computed once
        # per row tile and cached as bf16 for every N tile.
        @pl.when(j == 0)
        def _ln():
            xf = x_ref[...].astype(jnp.float32)
            mean = jnp.mean(xf, axis=-1, keepdims=True)
            var = jnp.mean(jnp.square(xf - mean), axis=-1, keepdims=True)
            xn = (xf - mean) * jax.lax.rsqrt(var + eps)
            xn = xn * g_ref[...].astype(jnp.float32) + bta_ref[...].astype(jnp.float32)
            xln_ref[...] = xn.astype(jnp.bfloat16)

        x = xln_ref[...]
    else:
        x = x_ref[...]
        if x.dtype != jnp.bfloat16:
            x = x.astype(jnp.bfloat16)

    w = w_ref[...]
    if w.dtype != jnp.bfloat16:
        w = w.astype(jnp.bfloat16)

    # bf16 operands, f32 accumulation on the MXU.
    acc_ref[...] += jnp.dot(x, w, preferred_element_type=jnp.float32)

    @pl.when(k == pl.num_programs(2) - 1)
    def _finish():
        y = acc_ref[...] + b_ref[...].astype(jnp.float32)
        if activation == "gelu":
            c = math.sqrt(2.0 / math.pi)
            y = 0.5 * y * (1.0 + jnp.tanh(c * (y + 0.044715 * y * y * y)))
        if has_residual:
            y = y + res_ref[...].astype(jnp.float32)
        o_ref[...] = y.astype(o_ref.dtype)


def fused_linear(x, w, b, *, gamma=None, beta=None, residual=None,
                 activation=None, eps=1e-6):
    M, K = x.shape
    _, N = w.shape
    has_ln = gamma is not None
    has_residual = residual is not None

    vmem_limit, tm_t, tn_t, tk_t = _hw_config()
    tm = _pick_tile(M, tm_t, (128, 8))
    tn = _pick_tile(N, tn_t, (256, 128))
    # LN needs the full feature (contraction) axis in one tile.
    tk = K if has_ln else _pick_tile(K, tk_t, (256, 128))
    grid = (M // tm, N // tn, K // tk)

    in_specs = [pl.BlockSpec((tm, tk), lambda i, j, k: (i, k))]
    inputs = [x]
    if has_ln:
        in_specs += [pl.BlockSpec((1, tk), lambda i, j, k: (0, k)),
                     pl.BlockSpec((1, tk), lambda i, j, k: (0, k))]
        inputs += [gamma.reshape(1, K), beta.reshape(1, K)]
    in_specs += [pl.BlockSpec((tk, tn), lambda i, j, k: (k, j)),
                 pl.BlockSpec((1, tn), lambda i, j, k: (0, j))]
    inputs += [w, b.reshape(1, N)]
    if has_residual:
        in_specs += [pl.BlockSpec((tm, tn), lambda i, j, k: (i, j))]
        inputs += [residual]

    scratch = [pltpu.VMEM((tm, tn), jnp.float32)]
    if has_ln:
        scratch.append(pltpu.VMEM((tm, tk), jnp.bfloat16))

    # Keep the N axis "arbitrary" when the LN cache is used so the j == 0
    # writer is guaranteed to run on the same core as its readers (megacore).
    semantics = ("parallel", "arbitrary" if has_ln else "parallel", "arbitrary")

    cost = pl.CostEstimate(
        flops=2 * M * K * N,
        transcendentals=(M * N if activation == "gelu" else 0),
        bytes_accessed=2 * (M * K + K * N + 2 * M * N))

    return pl.pallas_call(
        functools.partial(_fused_linear_kernel, eps=eps, activation=activation,
                          has_ln=has_ln, has_residual=has_residual),
        out_shape=jax.ShapeDtypeStruct((M, N), jnp.bfloat16),
        grid=grid,
        in_specs=in_specs,
        out_specs=pl.BlockSpec((tm, tn), lambda i, j, k: (i, j)),
        scratch_shapes=scratch,
        compiler_params=pltpu.CompilerParams(
            dimension_semantics=semantics,
            vmem_limit_bytes=vmem_limit),
        cost_estimate=cost,
    )(*inputs)


# --------------------------- relative attention -----------------------------
# Grid = (batch, query tiles); heads processed from the fused (L, 3H) QKV slab
# via static column slices (no HBM transposes). Mask is a (1, L) additive bias.

def _attention_kernel(*refs, heads, dh, scale, separate_q):
    it = iter(refs)
    q_ref = next(it) if separate_q else None
    kv_ref = next(it)
    if q_ref is None:
        q_ref = kv_ref
    rk_ref = next(it)
    rwb_ref = next(it)
    rrb_ref = next(it)
    mask_ref = next(it)
    o_ref = next(it)

    H = heads * dh
    rwb = rwb_ref[...].astype(jnp.float32)                        # (heads, dh)
    diff = (rrb_ref[...].astype(jnp.float32) - rwb) * scale       # (heads, dh)
    mask_bias = mask_ref[...]                                     # (1, L) 0 / -1e9
    nt = (((1,), (1,)), ((), ()))                                 # X @ Y^T

    for h in range(heads):
        lo, hi = h * dh, (h + 1) * dh
        # slice straight from the bf16 refs; only q gets a tiny f32 round-trip
        # for the r_w_bias fold.
        qh = q_ref[:, lo:hi].astype(jnp.float32)                  # (tq, dh)
        kh = kv_ref[:, H + lo:H + hi]                             # (L, dh) bf16
        vh = kv_ref[:, 2 * H + lo:2 * H + hi]                     # (L, dh) bf16
        rkh = rk_ref[:, lo:hi]                                    # (L, dh) bf16

        # scores = s*[(q+rwb)@k^T + (q+rrb)@rk^T]
        #        = (s*(q+rwb)) @ (k+rk)^T + (s*(rrb-rwb)) @ rk^T
        q_eff = ((qh + rwb[h:h + 1, :]) * scale).astype(jnp.bfloat16)
        s = jax.lax.dot_general(q_eff, kh + rkh, nt,
                                preferred_element_type=jnp.float32)   # (tq, L)
        bd = jax.lax.dot_general(diff[h:h + 1, :].astype(jnp.bfloat16), rkh, nt,
                                 preferred_element_type=jnp.float32)  # (1, L)
        s = s + bd + mask_bias

        m = jnp.max(s, axis=-1, keepdims=True)
        p = jnp.exp(s - m)
        denom = jnp.sum(p, axis=-1, keepdims=True)
        p = p * pl.reciprocal(denom, approx=True)                 # EUP, not VALU

        ctx = jnp.dot(p.astype(jnp.bfloat16), vh,
                      preferred_element_type=jnp.float32)
        # write each head back immediately: no concat, no heads*L*dh live set.
        o_ref[:, lo:hi] = ctx.astype(o_ref.dtype)


def rel_attention(qkv, rproj, r_w_bias, r_r_bias, mask_bias, *, heads, dh, B, L):
    H = heads * dh
    scale = 1.0 / math.sqrt(dh)

    # Query-tile grid axis: keeps the per-step scores footprint at (tq, L) and
    # gives v7x's two TensorCores a second parallel axis at realistic L.
    tq = L if L <= 128 else _pick_tile(L, 128, (8,))
    nq = L // tq
    separate_q = nq > 1

    in_specs = []
    inputs = []
    if separate_q:
        in_specs.append(pl.BlockSpec((tq, 3 * H), lambda b, qi: (b * nq + qi, 0)))
        inputs.append(qkv)
    in_specs.append(pl.BlockSpec((L, 3 * H), lambda b, qi: (b, 0)))
    inputs.append(qkv)
    in_specs += [
        pl.BlockSpec((L, H), lambda b, qi: (b, 0)),
        pl.BlockSpec((heads, dh), lambda b, qi: (0, 0)),
        pl.BlockSpec((heads, dh), lambda b, qi: (0, 0)),
        pl.BlockSpec((None, 1, L), lambda b, qi: (b, 0, 0)),
    ]
    inputs += [rproj, r_w_bias, r_r_bias, mask_bias]

    vmem_limit = _hw_config()[0]
    cost = pl.CostEstimate(
        flops=4 * B * heads * L * L * dh,
        transcendentals=B * heads * L * L,
        bytes_accessed=2 * B * L * (3 * H + 2 * H) + 4 * B * L)

    return pl.pallas_call(
        functools.partial(_attention_kernel, heads=heads, dh=dh, scale=scale,
                          separate_q=separate_q),
        out_shape=jax.ShapeDtypeStruct((B * L, H), qkv.dtype),
        grid=(B, nq),
        in_specs=in_specs,
        out_specs=pl.BlockSpec((tq, H), lambda b, qi: (b * nq + qi, 0)),
        compiler_params=pltpu.CompilerParams(
            dimension_semantics=("parallel", "parallel"),
            vmem_limit_bytes=vmem_limit),
        cost_estimate=cost,
    )(*inputs)


# ------------------------------ model glue ----------------------------------

def init_params(key, *, vocab_size, max_len, hidden, heads, n_layers,
                rating_num, time_num):
    dh = hidden // heads
    keys = jax.random.split(key, 8 + n_layers)

    def nrm(k, shape, dtype=jnp.float32):
        return (jax.random.normal(k, shape, jnp.float32) * 0.02).astype(dtype)

    params = {
        "tok": nrm(keys[0], (vocab_size, hidden)),
        "pos": nrm(keys[1], (max_len, hidden)),
        "time": nrm(keys[2], (time_num, hidden)),
        "rating": nrm(keys[3], (rating_num, hidden)),
        "r_w_bias": nrm(keys[4], (heads, dh)),
        "r_r_bias": nrm(keys[5], (heads, dh)),
        "blocks": [],
    }
    for li in range(n_layers):
        bk = jax.random.split(keys[8 + li], 8)
        blk = {
            "ln1_g": jnp.ones((hidden,), jnp.float32),
            "ln1_b": jnp.zeros((hidden,), jnp.float32),
            # bf16 weights: these GEMMs are weight-streaming / HBM bound.
            "w_qkv": nrm(bk[0], (hidden, 3 * hidden), jnp.bfloat16),
            "b_qkv": jnp.zeros((3 * hidden,), jnp.float32),
            "wr": nrm(bk[3], (hidden, hidden), jnp.bfloat16),
            "br": jnp.zeros((hidden,), jnp.float32),
            "wo": nrm(bk[4], (hidden, hidden), jnp.bfloat16),
            "bo": jnp.zeros((hidden,), jnp.float32),
            "ln2_g": jnp.ones((hidden,), jnp.float32),
            "ln2_b": jnp.zeros((hidden,), jnp.float32),
            "w1": nrm(bk[5], (hidden, 4 * hidden), jnp.bfloat16),
            "b1": jnp.zeros((4 * hidden,), jnp.float32),
            "w2": nrm(bk[6], (4 * hidden, hidden), jnp.bfloat16),
            "b2": jnp.zeros((hidden,), jnp.float32),
        }
        params["blocks"].append(blk)
    return params


def transformer_block(h, rproj, r_w_bias, r_r_bias, mask_bias, p, heads, B, L):
    M, H = h.shape
    dh = H // heads

    # pre-norm attention sublayer: LN fused into the QKV GEMM prologue.
    qkv = fused_linear(h, p["w_qkv"], p["b_qkv"],
                       gamma=p["ln1_g"], beta=p["ln1_b"])
    ctx = rel_attention(qkv, rproj, r_w_bias, r_r_bias, mask_bias,
                        heads=heads, dh=dh, B=B, L=L)
    h = fused_linear(ctx, p["wo"], p["bo"], residual=h)    # residual fused

    # pre-norm FFN sublayer: LN+GELU fused into FFN1, residual fused into FFN2.
    ff = fused_linear(h, p["w1"], p["b1"],
                      gamma=p["ln2_g"], beta=p["ln2_b"], activation="gelu")
    h = fused_linear(ff, p["w2"], p["b2"], residual=h)
    return h


def bert_forward(params, x_ids, r_ids, t_ids, heads):
    B, L = x_ids.shape
    H = params["tok"].shape[1]

    # additive key-mask bias (0 / -1e9): single add in-kernel instead of cmp+sel
    mask_bias = jnp.where(x_ids > 0, 0.0, -1e9).astype(jnp.float32).reshape(B, 1, L)

    # BERTEmbedding: item + learned position + time; rating handed to blocks.
    # TODO(synk): embedding gathers stay in XLA (no clean dense-Pallas gather
    # at these vocab sizes).
    h = params["tok"][x_ids] + params["pos"][None, :L, :] + params["time"][t_ids]
    r_emb = params["rating"][r_ids]
    h2 = h.reshape(B * L, H).astype(jnp.bfloat16)
    r2 = r_emb.reshape(B * L, H).astype(jnp.bfloat16)

    # rating projection is layer-invariant in its input: one wide GEMM computes
    # every layer's rproj before the loop (instead of n_layers skinny GEMMs).
    wr_all = jnp.concatenate([p["wr"] for p in params["blocks"]], axis=1)
    br_all = jnp.concatenate([p["br"] for p in params["blocks"]], axis=0)
    rproj_all = fused_linear(r2, wr_all, br_all)            # (B*L, n_layers*H)

    for li, p in enumerate(params["blocks"]):
        rproj = rproj_all[:, li * H:(li + 1) * H]
        h2 = transformer_block(h2, rproj, params["r_w_bias"], params["r_r_bias"],
                               mask_bias, p, heads, B, L)
    return h2.reshape(B, L, H).astype(jnp.float32)


if __name__ == "__main__":
    B, L = 2, 8                 # batch, bert_max_len
    hidden, heads, n_layers = 32, 2, 2
    num_items = 20
    vocab_size = num_items + 2
    bucket_num = 8
    time_num = bucket_num + 1
    rating_num = 5 + 1

    key = jax.random.PRNGKey(0)
    kp, kx, kr, kt = jax.random.split(key, 4)
    params = init_params(kp, vocab_size=vocab_size, max_len=L, hidden=hidden,
                         heads=heads, n_layers=n_layers,
                         rating_num=rating_num, time_num=time_num)
    x_ids = jax.random.randint(kx, (B, L), 0, vocab_size)   # item ids (0 = pad)
    r_ids = jax.random.randint(kr, (B, L), 0, rating_num)   # rating ids
    t_ids = jax.random.randint(kt, (B, L), 0, time_num)     # time-bucket ids

    fwd = jax.jit(functools.partial(bert_forward, heads=heads))
    out = fwd(params, x_ids, r_ids, t_ids)
    out = jax.block_until_ready(out)
    assert out.shape == (B, L, hidden)
    assert bool(jnp.all(jnp.isfinite(out)))
    print("KERNEL_OK")
</pallas_src>

<mosaic_0001>
module attributes {stable_mosaic.version = 11 : i64} {
  func.func @_fused_linear_kernel(%arg0: i32, %arg1: i32, %arg2: i32, %arg3: memref<16x32xbf16, #tpu.memory_space<vmem>>, %arg4: memref<32x64xbf16, #tpu.memory_space<vmem>>, %arg5: memref<1x64xf32, #tpu.memory_space<vmem>>, %arg6: memref<16x64xbf16, #tpu.memory_space<vmem>>, %arg7: memref<16x64xf32, #tpu.memory_space<vmem>>) attributes {dimension_semantics = [#tpu.dimension_semantics<parallel>, #tpu.dimension_semantics<parallel>, #tpu.dimension_semantics<arbitrary>], iteration_bounds = array<i64: 1, 1, 1>, scalar_prefetch = 0 : i64, scratch_operands = 1 : i64, tpu.core_type = #tpu.core_type<tc>, window_params = [{transform_indices = @transform_0, window_bounds = array<i64: 16, 32>}, {transform_indices = @transform_1, window_bounds = array<i64: 32, 64>}, {transform_indices = @transform_2, window_bounds = array<i64: 1, 64>}, {transform_indices = @transform_3, window_bounds = array<i64: 16, 64>}]} {
    %c0_i32 = arith.constant 0 : i32
    %0 = arith.cmpi eq, %arg2, %c0_i32 : i32
    %1 = arith.extui %0 : i1 to i32
    %c0_i32_0 = arith.constant 0 : i32
    %2 = arith.cmpi ne, %1, %c0_i32_0 : i32
    scf.if %2 {
      %cst_10 = arith.constant 0.000000e+00 : f32
      %12 = vector.broadcast %cst_10 : f32 to vector<16x64xf32>
      %c0_11 = arith.constant 0 : index
      %c0_12 = arith.constant 0 : index
      %13 = vector.load %arg7[%c0_11, %c0_12] : memref<16x64xf32, #tpu.memory_space<vmem>>, vector<16x64xf32>
      tpu.vector_store %arg7[%c0_11, %c0_12], %12 {strides = array<i32>} : memref<16x64xf32, #tpu.memory_space<vmem>>, vector<16x64xf32>,
    } else {
    }
    %c0 = arith.constant 0 : index
    %c0_1 = arith.constant 0 : index
    %3 = vector.load %arg3[%c0, %c0_1] : memref<16x32xbf16, #tpu.memory_space<vmem>>, vector<16x32xbf16>
    %c0_2 = arith.constant 0 : index
    %c0_3 = arith.constant 0 : index
    %4 = vector.load %arg4[%c0_2, %c0_3] : memref<32x64xbf16, #tpu.memory_space<vmem>>, vector<32x64xbf16>
    %c0_4 = arith.constant 0 : index
    %c0_5 = arith.constant 0 : index
    %5 = vector.load %arg7[%c0_4, %c0_5] : memref<16x64xf32, #tpu.memory_space<vmem>>, vector<16x64xf32>
    %cst = arith.constant dense<0.000000e+00> : vector<16x64xf32>
    %6 = tpu.matmul %3, %4, %cst {dimension_numbers = #tpu.dot_dimension_numbers<[1], [0], [0], [1], [0, 0, 1, 1], [], []>} : vector<16x32xbf16>, vector<32x64xbf16>, vector<16x64xf32> -> vector<16x64xf32>
    %7 = arith.addf %5, %6 : vector<16x64xf32>
    %c0_6 = arith.constant 0 : index
    %c0_7 = arith.constant 0 : index
    %8 = vector.load %arg7[%c0_6, %c0_7] : memref<16x64xf32, #tpu.memory_space<vmem>>, vector<16x64xf32>
    tpu.vector_store %arg7[%c0_6, %c0_7], %7 {strides = array<i32>} : memref<16x64xf32, #tpu.memory_space<vmem>>, vector<16x64xf32>,
    %c0_i32_8 = arith.constant 0 : i32
    %9 = arith.cmpi eq, %arg2, %c0_i32_8 : i32
    %10 = arith.extui %9 : i1 to i32
    %c0_i32_9 = arith.constant 0 : i32
    %11 = arith.cmpi ne, %10, %c0_i32_9 : i32
    scf.if %11 {
      %c0_10 = arith.constant 0 : index
      %c0_11 = arith.constant 0 : index
      %12 = vector.load %arg7[%c0_10, %c0_11] : memref<16x64xf32, #tpu.memory_space<vmem>>, vector<16x64xf32>
      %c0_12 = arith.constant 0 : index
      %c0_13 = arith.constant 0 : index
      %13 = vector.load %arg5[%c0_12, %c0_13] : memref<1x64xf32, #tpu.memory_space<vmem>>, vector<1x64xf32>
      %14 = vector.broadcast %13 : vector<1x64xf32> to vector<16x64xf32>
      %15 = arith.addf %12, %14 : vector<16x64xf32>
      %16 = arith.truncf %15 : vector<16x64xf32> to vector<16x64xbf16>
      %c0_14 = arith.constant 0 : index
      %c0_15 = arith.constant 0 : index
      %17 = vector.load %arg6[%c0_14, %c0_15] : memref<16x64xbf16, #tpu.memory_space<vmem>>, vector<16x64xbf16>
      tpu.vector_store %arg6[%c0_14, %c0_15], %16 {strides = array<i32>} : memref<16x64xbf16, #tpu.memory_space<vmem>>, vector<16x64xbf16>,
    } else {
    }
    return
  }
  func.func @transform_0(%arg0: i32, %arg1: i32, %arg2: i32) -> (i32, i32) {
    %c0_i32 = arith.constant 0 : i32
    return %arg0, %arg2 : i32, i32
  }
  func.func @transform_1(%arg0: i32, %arg1: i32, %arg2: i32) -> (i32, i32) {
    %c0_i32 = arith.constant 0 : i32
    return %arg2, %arg1 : i32, i32
  }
  func.func @transform_2(%arg0: i32, %arg1: i32, %arg2: i32) -> (i32, i32) {
    %c0_i32 = arith.constant 0 : i32
    %c0_i32_0 = arith.constant 0 : i32
    return %c0_i32, %arg1 : i32, i32
  }
  func.func @transform_3(%arg0: i32, %arg1: i32, %arg2: i32) -> (i32, i32) {
    %c0_i32 = arith.constant 0 : i32
    return %arg0, %arg1 : i32, i32
  }
}

module attributes {stable_mosaic.version = 11 : i64} {
  func.func @_fused_linear_kernel(%arg0: i32, %arg1: i32, %arg2: i32, %arg3: memref<16x32xbf16, #tpu.memory_space<vmem>>, %arg4: memref<1x32xf32, #tpu.memory_space<vmem>>, %arg5: memref<1x32xf32, #tpu.memory_space<vmem>>, %arg6: memref<32x96xbf16, #tpu.memory_space<vmem>>, %arg7: memref<1x96xf32, #tpu.memory_space<vmem>>, %arg8: memref<16x96xbf16, #tpu.memory_space<vmem>>, %arg9: memref<16x96xf32, #tpu.memory_space<vmem>>, %arg10: memref<16x32xbf16, #tpu.memory_space<vmem>>) attributes {dimension_semantics = [#tpu.dimension_semantics<parallel>, #tpu.dimension_semantics<arbitrary>, #tpu.dimension_semantics<arbitrary>], iteration_bounds = array<i64: 1, 1, 1>, scalar_prefetch = 0 : i64, scratch_operands = 2 : i64, tpu.core_type = #tpu.core_type<tc>, window_params = [{transform_indices = @transform_0, window_bounds = array<i64: 16, 32>}, {transform_indices = @transform_1, window_bounds = array<i64: 1, 32>}, {transform_indices = @transform_2, window_bounds = array<i64: 1, 32>}, {transform_indices = @transform_3, window_bounds = array<i64: 32, 96>}, {transform_indices = @transform_4, window_bounds = array<i64: 1, 96>}, {transform_indices = @transform_5, window_bounds = array<i64: 16, 96>}]} {
    %c0_i32 = arith.constant 0 : i32
    %0 = arith.cmpi eq, %arg2, %c0_i32 : i32
    %1 = arith.extui %0 : i1 to i32
    %c0_i32_0 = arith.constant 0 : i32
    %2 = arith.cmpi ne, %1, %c0_i32_0 : i32
    scf.if %2 {
      %cst_12 = arith.constant 0.000000e+00 : f32
      %15 = vector.broadcast %cst_12 : f32 to vector<16x96xf32>
      %c0_13 = arith.constant 0 : index
      %c0_14 = arith.constant 0 : index
      %16 = vector.load %arg9[%c0_13, %c0_14] : memref<16x96xf32, #tpu.memory_space<vmem>>, vector<16x96xf32>
      tpu.vector_store %arg9[%c0_13, %c0_14], %15 {strides = array<i32>} : memref<16x96xf32, #tpu.memory_space<vmem>>, vector<16x96xf32>,
    } else {
    }
    %c0_i32_1 = arith.constant 0 : i32
    %3 = arith.cmpi eq, %arg1, %c0_i32_1 : i32
    %4 = arith.extui %3 : i1 to i32
    %c0_i32_2 = arith.constant 0 : i32
    %5 = arith.cmpi ne, %4, %c0_i32_2 : i32
    scf.if %5 {
      %c0_12 = arith.constant 0 : index
      %c0_13 = arith.constant 0 : index
      %15 = vector.load %arg3[%c0_12, %c0_13] : memref<16x32xbf16, #tpu.memory_space<vmem>>, vector<16x32xbf16>
      %16 = arith.extf %15 : vector<16x32xbf16> to vector<16x32xf32>
      %cst_14 = arith.constant dense<0.000000e+00> : vector<16xf32>
      %17 = vector.multi_reduction <add>, %16, %cst_14 [1] : vector<16x32xf32> to vector<16xf32>
      %18 = vector.shape_cast %17 : vector<16xf32> to vector<16x1xf32>
      %cst_15 = arith.constant 3.200000e+01 : f32
      %19 = vector.broadcast %cst_15 : f32 to vector<16x1xf32>
      %20 = arith.divf %18, %19 : vector<16x1xf32>
      %21 = vector.broadcast %20 : vector<16x1xf32> to vector<16x32xf32>
      %22 = arith.subf %16, %21 : vector<16x32xf32>
      %23 = arith.mulf %22, %22 : vector<16x32xf32>
      %cst_16 = arith.constant dense<0.000000e+00> : vector<16xf32>
      %24 = vector.multi_reduction <add>, %23, %cst_16 [1] : vector<16x32xf32> to vector<16xf32>
      %25 = vector.shape_cast %24 : vector<16xf32> to vector<16x1xf32>
      %cst_17 = arith.constant 3.200000e+01 : f32
      %26 = vector.broadcast %cst_17 : f32 to vector<16x1xf32>
      %27 = arith.divf %25, %26 : vector<16x1xf32>
      %28 = vector.broadcast %20 : vector<16x1xf32> to vector<16x32xf32>
      %29 = arith.subf %16, %28 : vector<16x32xf32>
      %cst_18 = arith.constant 9.99999997E-7 : f32
      %30 = vector.broadcast %cst_18 : f32 to vector<16x1xf32>
      %31 = arith.addf %27, %30 : vector<16x1xf32>
      %32 = math.rsqrt %31 : vector<16x1xf32>
      %33 = vector.broadcast %32 : vector<16x1xf32> to vector<16x32xf32>
      %34 = arith.mulf %29, %33 : vector<16x32xf32>
      %c0_19 = arith.constant 0 : index
      %c0_20 = arith.constant 0 : index
      %35 = vector.load %arg4[%c0_19, %c0_20] : memref<1x32xf32, #tpu.memory_space<vmem>>, vector<1x32xf32>
      %36 = vector.broadcast %35 : vector<1x32xf32> to vector<16x32xf32>
      %37 = arith.mulf %34, %36 : vector<16x32xf32>
      %c0_21 = arith.constant 0 : index
      %c0_22 = arith.constant 0 : index
      %38 = vector.load %arg5[%c0_21, %c0_22] : memref<1x32xf32, #tpu.memory_space<vmem>>, vector<1x32xf32>
      %39 = vector.broadcast %38 : vector<1x32xf32> to vector<16x32xf32>
      %40 = arith.addf %37, %39 : vector<16x32xf32>
      %41 = arith.truncf %40 : vector<16x32xf32> to vector<16x32xbf16>
      %c0_23 = arith.constant 0 : index
      %c0_24 = arith.constant 0 : index
      %42 = vector.load %arg10[%c0_23, %c0_24] : memref<16x32xbf16, #tpu.memory_space<vmem>>, vector<16x32xbf16>
      tpu.vector_store %arg10[%c0_23, %c0_24], %41 {strides = array<i32>} : memref<16x32xbf16, #tpu.memory_space<vmem>>, vector<16x32xbf16>,
    } else {
    }
    %c0 = arith.constant 0 : index
    %c0_3 = arith.constant 0 : index
    %6 = vector.load %arg10[%c0, %c0_3] : memref<16x32xbf16, #tpu.memory_space<vmem>>, vector<16x32xbf16>
    %c0_4 = arith.constant 0 : index
    %c0_5 = arith.constant 0 : index
    %7 = vector.load %arg6[%c0_4, %c0_5] : memref<32x96xbf16, #tpu.memory_space<vmem>>, vector<32x96xbf16>
    %c0_6 = arith.constant 0 : index
    %c0_7 = arith.constant 0 : index
    %8 = vector.load %arg9[%c0_6, %c0_7] : memref<16x96xf32, #tpu.memory_space<vmem>>, vector<16x96xf32>
    %cst = arith.constant dense<0.000000e+00> : vector<16x96xf32>
    %9 = tpu.matmul %6, %7, %cst {dimension_numbers = #tpu.dot_dimension_numbers<[1], [0], [0], [1], [0, 0, 1, 1], [], []>} : vector<16x32xbf16>, vector<32x96xbf16>, vector<16x96xf32> -> vector<16x96xf32>
    %10 = arith.addf %8, %9 : vector<16x96xf32>
    %c0_8 = arith.constant 0 : index
    %c0_9 = arith.constant 0 : index
    %11 = vector.load %arg9[%c0_8, %c0_9] : memref<16x96xf32, #tpu.memory_space<vmem>>, vector<16x96xf32>
    tpu.vector_store %arg9[%c0_8, %c0_9], %10 {strides = array<i32>} : memref<16x96xf32, #tpu.memory_space<vmem>>, vector<16x96xf32>,
    %c0_i32_10 = arith.constant 0 : i32
    %12 = arith.cmpi eq, %arg2, %c0_i32_10 : i32
    %13 = arith.extui %12 : i1 to i32
    %c0_i32_11 = arith.constant 0 : i32
    %14 = arith.cmpi ne, %13, %c0_i32_11 : i32
    scf.if %14 {
      %c0_12 = arith.constant 0 : index
      %c0_13 = arith.constant 0 : index
      %15 = vector.load %arg9[%c0_12, %c0_13] : memref<16x96xf32, #tpu.memory_space<vmem>>, vector<16x96xf32>
      %c0_14 = arith.constant 0 : index
      %c0_15 = arith.constant 0 : index
      %16 = vector.load %arg7[%c0_14, %c0_15] : memref<1x96xf32, #tpu.memory_space<vmem>>, vector<1x96xf32>
      %17 = vector.broadcast %16 : vector<1x96xf32> to vector<16x96xf32>
      %18 = arith.addf %15, %17 : vector<16x96xf32>
      %19 = arith.truncf %18 : vector<16x96xf32> to vector<16x96xbf16>
      %c0_16 = arith.constant 0 : index
      %c0_17 = arith.constant 0 : index
      %20 = vector.load %arg8[%c0_16, %c0_17] : memref<16x96xbf16, #tpu.memory_space<vmem>>, vector<16x96xbf16>
      tpu.vector_store %arg8[%c0_16, %c0_17], %19 {strides = array<i32>} : memref<16x96xbf16, #tpu.memory_space<vmem>>, vector<16x96xbf16>,
    } else {
    }
    return
  }
  func.func @transform_0(%arg0: i32, %arg1: i32, %arg2: i32) -> (i32, i32) {
    %c0_i32 = arith.constant 0 : i32
    return %arg0, %arg2 : i32, i32
  }
  func.func @transform_1(%arg0: i32, %arg1: i32, %arg2: i32) -> (i32, i32) {
    %c0_i32 = arith.constant 0 : i32
    %c0_i32_0 = arith.constant 0 : i32
    return %c0_i32, %arg2 : i32, i32
  }
  func.func @transform_2(%arg0: i32, %arg1: i32, %arg2: i32) -> (i32, i32) {
    %c0_i32 = arith.constant 0 : i32
    %c0_i32_0 = arith.constant 0 : i32
    return %c0_i32, %arg2 : i32, i32
  }
  func.func @transform_3(%arg0: i32, %arg1: i32, %arg2: i32) -> (i32, i32) {
    %c0_i32 = arith.constant 0 : i32
    return %arg2, %arg1 : i32, i32
  }
  func.func @transform_4(%arg0: i32, %arg1: i32, %arg2: i32) -> (i32, i32) {
    %c0_i32 = arith.constant 0 : i32
    %c0_i32_0 = arith.constant 0 : i32
    return %c0_i32, %arg1 : i32, i32
  }
  func.func @transform_5(%arg0: i32, %arg1: i32, %arg2: i32) -> (i32, i32) {
    %c0_i32 = arith.constant 0 : i32
    return %arg0, %arg1 : i32, i32
  }
}

module attributes {stable_mosaic.version = 11 : i64} {
  func.func @_attention_kernel(%arg0: i32, %arg1: i32, %arg2: memref<8x96xbf16, #tpu.memory_space<vmem>>, %arg3: memref<8x32xbf16, #tpu.memory_space<vmem>>, %arg4: memref<2x16xf32, #tpu.memory_space<vmem>>, %arg5: memref<2x16xf32, #tpu.memory_space<vmem>>, %arg6: memref<1x1x8xf32, #tpu.memory_space<vmem>>, %arg7: memref<8x32xbf16, #tpu.memory_space<vmem>>) attributes {dimension_semantics = [#tpu.dimension_semantics<parallel>, #tpu.dimension_semantics<parallel>], iteration_bounds = array<i64: 2, 1>, scalar_prefetch = 0 : i64, scratch_operands = 0 : i64, tpu.core_type = #tpu.core_type<tc>, window_params = [{transform_indices = @transform_0, window_bounds = array<i64: 8, 96>}, {transform_indices = @transform_1, window_bounds = array<i64: 8, 32>}, {pipeline_mode = #tpu.pipeline_mode<synchronous>, transform_indices = @transform_2, window_bounds = array<i64: 2, 16>}, {pipeline_mode = #tpu.pipeline_mode<synchronous>, transform_indices = @transform_3, window_bounds = array<i64: 2, 16>}, {transform_indices = @transform_4, window_bounds = array<i64: 1, 1, 8>}, {transform_indices = @transform_5, window_bounds = array<i64: 8, 32>}]} {
    %c0 = arith.constant 0 : index
    %c0_0 = arith.constant 0 : index
    %0 = vector.load %arg4[%c0, %c0_0] : memref<2x16xf32, #tpu.memory_space<vmem>>, vector<2x16xf32>
    %c0_1 = arith.constant 0 : index
    %c0_2 = arith.constant 0 : index
    %1 = vector.load %arg5[%c0_1, %c0_2] : memref<2x16xf32, #tpu.memory_space<vmem>>, vector<2x16xf32>
    %2 = arith.subf %1, %0 : vector<2x16xf32>
    %cst = arith.constant 2.500000e-01 : f32
    %3 = vector.broadcast %cst : f32 to vector<2x16xf32>
    %4 = arith.mulf %2, %3 : vector<2x16xf32>
    %c0_3 = arith.constant 0 : index
    %c0_4 = arith.constant 0 : index
    %c0_5 = arith.constant 0 : index
    %5 = vector.load %arg6[%c0_3, %c0_4, %c0_5] : memref<1x1x8xf32, #tpu.memory_space<vmem>>, vector<1x1x8xf32>
    %6 = vector.shape_cast %5 : vector<1x1x8xf32> to vector<1x8xf32>
    %c0_6 = arith.constant 0 : index
    %c0_7 = arith.constant 0 : index
    %7 = vector.load %arg2[%c0_6, %c0_7] : memref<8x96xbf16, #tpu.memory_space<vmem>>, vector<8x16xbf16>
    %8 = arith.extf %7 : vector<8x16xbf16> to vector<8x16xf32>
    %c0_8 = arith.constant 0 : index
    %c32 = arith.constant 32 : index
    %9 = vector.load %arg2[%c0_8, %c32] : memref<8x96xbf16, #tpu.memory_space<vmem>>, vector<8x16xbf16>
    %c0_9 = arith.constant 0 : index
    %c64 = arith.constant 64 : index
    %10 = vector.load %arg2[%c0_9, %c64] : memref<8x96xbf16, #tpu.memory_space<vmem>>, vector<8x16xbf16>
    %c0_10 = arith.constant 0 : index
    %c0_11 = arith.constant 0 : index
    %11 = vector.load %arg3[%c0_10, %c0_11] : memref<8x32xbf16, #tpu.memory_space<vmem>>, vector<8x16xbf16>
    %12 = vector.extract_strided_slice %0 {offsets = [0, 0], sizes = [1, 16], strides = [1, 1]} : vector<2x16xf32> to vector<1x16xf32>
    %13 = vector.broadcast %12 : vector<1x16xf32> to vector<8x16xf32>
    %14 = arith.addf %8, %13 : vector<8x16xf32>
    %cst_12 = arith.constant 2.500000e-01 : f32
    %15 = vector.broadcast %cst_12 : f32 to vector<8x16xf32>
    %16 = arith.mulf %14, %15 : vector<8x16xf32>
    %17 = arith.truncf %16 : vector<8x16xf32> to vector<8x16xbf16>
    %18 = arith.addf %9, %11 : vector<8x16xbf16>
    %cst_13 = arith.constant dense<0.000000e+00> : vector<8x8xf32>
    %19 = tpu.matmul %17, %18, %cst_13 {dimension_numbers = #tpu.dot_dimension_numbers<[1], [1], [0], [0], [0, 0, 1, 0], [], []>} : vector<8x16xbf16>, vector<8x16xbf16>, vector<8x8xf32> -> vector<8x8xf32>
    %20 = vector.extract_strided_slice %4 {offsets = [0, 0], sizes = [1, 16], strides = [1, 1]} : vector<2x16xf32> to vector<1x16xf32>
    %21 = arith.truncf %20 : vector<1x16xf32> to vector<1x16xbf16>
    %cst_14 = arith.constant dense<0.000000e+00> : vector<1x8xf32>
    %22 = tpu.matmul %21, %11, %cst_14 {dimension_numbers = #tpu.dot_dimension_numbers<[1], [1], [0], [0], [0, 0, 1, 0], [], []>} : vector<1x16xbf16>, vector<8x16xbf16>, vector<1x8xf32> -> vector<1x8xf32>
    %23 = vector.broadcast %22 : vector<1x8xf32> to vector<8x8xf32>
    %24 = arith.addf %19, %23 : vector<8x8xf32>
    %25 = vector.broadcast %6 : vector<1x8xf32> to vector<8x8xf32>
    %26 = arith.addf %24, %25 : vector<8x8xf32>
    %cst_15 = arith.constant dense<0xFF800000> : vector<8xf32>
    %27 = vector.multi_reduction <maximumf>, %26, %cst_15 [1] : vector<8x8xf32> to vector<8xf32>
    %28 = vector.shape_cast %27 : vector<8xf32> to vector<8x1xf32>
    %29 = vector.broadcast %28 : vector<8x1xf32> to vector<8x8xf32>
    %30 = arith.subf %26, %29 : vector<8x8xf32>
    %31 = math.exp %30 : vector<8x8xf32>
    %cst_16 = arith.constant dense<0.000000e+00> : vector<8xf32>
    %32 = vector.multi_reduction <add>, %31, %cst_16 [1] : vector<8x8xf32> to vector<8xf32>
    %33 = vector.shape_cast %32 : vector<8xf32> to vector<8x1xf32>
    %34 = tpu.reciprocal %33 {approx = true} : vector<8x1xf32> -> vector<8x1xf32>
    %35 = vector.broadcast %34 : vector<8x1xf32> to vector<8x8xf32>
    %36 = arith.mulf %31, %35 : vector<8x8xf32>
    %37 = arith.truncf %36 : vector<8x8xf32> to vector<8x8xbf16>
    %cst_17 = arith.constant dense<0.000000e+00> : vector<8x16xf32>
    %38 = tpu.matmul %37, %10, %cst_17 {dimension_numbers = #tpu.dot_dimension_numbers<[1], [0], [0], [1], [0, 0, 1, 1], [], []>} : vector<8x8xbf16>, vector<8x16xbf16>, vector<8x16xf32> -> vector<8x16xf32>
    %39 = arith.truncf %38 : vector<8x16xf32> to vector<8x16xbf16>
    %c0_18 = arith.constant 0 : index
    %c0_19 = arith.constant 0 : index
    %40 = vector.load %arg7[%c0_18, %c0_19] : memref<8x32xbf16, #tpu.memory_space<vmem>>, vector<8x16xbf16>
    tpu.vector_store %arg7[%c0_18, %c0_19], %39 {strides = array<i32>} : memref<8x32xbf16, #tpu.memory_space<vmem>>, vector<8x16xbf16>,
    %c0_20 = arith.constant 0 : index
    %c16 = arith.constant 16 : index
    %41 = vector.load %arg2[%c0_20, %c16] : memref<8x96xbf16, #tpu.memory_space<vmem>>, vector<8x16xbf16>
    %42 = arith.extf %41 : vector<8x16xbf16> to vector<8x16xf32>
    %c0_21 = arith.constant 0 : index
    %c48 = arith.constant 48 : index
    %43 = vector.load %arg2[%c0_21, %c48] : memref<8x96xbf16, #tpu.memory_space<vmem>>, vector<8x16xbf16>
    %c0_22 = arith.constant 0 : index
    %c80 = arith.constant 80 : index
    %44 = vector.load %arg2[%c0_22, %c80] : memref<8x96xbf16, #tpu.memory_space<vmem>>, vector<8x16xbf16>
    %c0_23 = arith.constant 0 : index
    %c16_24 = arith.constant 16 : index
    %45 = vector.load %arg3[%c0_23, %c16_24] : memref<8x32xbf16, #tpu.memory_space<vmem>>, vector<8x16xbf16>
    %46 = vector.extract_strided_slice %0 {offsets = [1, 0], sizes = [1, 16], strides = [1, 1]} : vector<2x16xf32> to vector<1x16xf32>
    %47 = vector.broadcast %46 : vector<1x16xf32> to vector<8x16xf32>
    %48 = arith.addf %42, %47 : vector<8x16xf32>
    %cst_25 = arith.constant 2.500000e-01 : f32
    %49 = vector.broadcast %cst_25 : f32 to vector<8x16xf32>
    %50 = arith.mulf %48, %49 : vector<8x16xf32>
    %51 = arith.truncf %50 : vector<8x16xf32> to vector<8x16xbf16>
    %52 = arith.addf %43, %45 : vector<8x16xbf16>
    %cst_26 = arith.constant dense<0.000000e+00> : vector<8x8xf32>
    %53 = tpu.matmul %51, %52, %cst_26 {dimension_numbers = #tpu.dot_dimension_numbers<[1], [1], [0], [0], [0, 0, 1, 0], [], []>} : vector<8x16xbf16>, vector<8x16xbf16>, vector<8x8xf32> -> vector<8x8xf32>
    %54 = vector.extract_strided_slice %4 {offsets = [1, 0], sizes = [1, 16], strides = [1, 1]} : vector<2x16xf32> to vector<1x16xf32>
    %55 = arith.truncf %54 : vector<1x16xf32> to vector<1x16xbf16>
    %cst_27 = arith.constant dense<0.000000e+00> : vector<1x8xf32>
    %56 = tpu.matmul %55, %45, %cst_27 {dimension_numbers = #tpu.dot_dimension_numbers<[1], [1], [0], [0], [0, 0, 1, 0], [], []>} : vector<1x16xbf16>, vector<8x16xbf16>, vector<1x8xf32> -> vector<1x8xf32>
    %57 = vector.broadcast %56 : vector<1x8xf32> to vector<8x8xf32>
    %58 = arith.addf %53, %57 : vector<8x8xf32>
    %59 = vector.broadcast %6 : vector<1x8xf32> to vector<8x8xf32>
    %60 = arith.addf %58, %59 : vector<8x8xf32>
    %cst_28 = arith.constant dense<0xFF800000> : vector<8xf32>
    %61 = vector.multi_reduction <maximumf>, %60, %cst_28 [1] : vector<8x8xf32> to vector<8xf32>
    %62 = vector.shape_cast %61 : vector<8xf32> to vector<8x1xf32>
    %63 = vector.broadcast %62 : vector<8x1xf32> to vector<8x8xf32>
    %64 = arith.subf %60, %63 : vector<8x8xf32>
    %65 = math.exp %64 : vector<8x8xf32>
    %cst_29 = arith.constant dense<0.000000e+00> : vector<8xf32>
    %66 = vector.multi_reduction <add>, %65, %cst_29 [1] : vector<8x8xf32> to vector<8xf32>
    %67 = vector.shape_cast %66 : vector<8xf32> to vector<8x1xf32>
    %68 = tpu.reciprocal %67 {approx = true} : vector<8x1xf32> -> vector<8x1xf32>
    %69 = vector.broadcast %68 : vector<8x1xf32> to vector<8x8xf32>
    %70 = arith.mulf %65, %69 : vector<8x8xf32>
    %71 = arith.truncf %70 : vector<8x8xf32> to vector<8x8xbf16>
    %cst_30 = arith.constant dense<0.000000e+00> : vector<8x16xf32>
    %72 = tpu.matmul %71, %44, %cst_30 {dimension_numbers = #tpu.dot_dimension_numbers<[1], [0], [0], [1], [0, 0, 1, 1], [], []>} : vector<8x8xbf16>, vector<8x16xbf16>, vector<8x16xf32> -> vector<8x16xf32>
    %73 = arith.truncf %72 : vector<8x16xf32> to vector<8x16xbf16>
    %c0_31 = arith.constant 0 : index
    %c16_32 = arith.constant 16 : index
    %74 = vector.load %arg7[%c0_31, %c16_32] : memref<8x32xbf16, #tpu.memory_space<vmem>>, vector<8x16xbf16>
    tpu.vector_store %arg7[%c0_31, %c16_32], %73 {strides = array<i32>} : memref<8x32xbf16, #tpu.memory_space<vmem>>, vector<8x16xbf16>,
    return
  }
  func.func @transform_0(%arg0: i32, %arg1: i32) -> (i32, i32) {
    %c0_i32 = arith.constant 0 : i32
    %c0_i32_0 = arith.constant 0 : i32
    return %arg0, %c0_i32 : i32, i32
  }
  func.func @transform_1(%arg0: i32, %arg1: i32) -> (i32, i32) {
    %c0_i32 = arith.constant 0 : i32
    %c0_i32_0 = arith.constant 0 : i32
    return %arg0, %c0_i32 : i32, i32
  }
  func.func @transform_2(%arg0: i32, %arg1: i32) -> (i32, i32) {
    %c0_i32 = arith.constant 0 : i32
    %c0_i32_0 = arith.constant 0 : i32
    %c0_i32_1 = arith.constant 0 : i32
    return %c0_i32, %c0_i32_0 : i32, i32
  }
  func.func @transform_3(%arg0: i32, %arg1: i32) -> (i32, i32) {
    %c0_i32 = arith.constant 0 : i32
    %c0_i32_0 = arith.constant 0 : i32
    %c0_i32_1 = arith.constant 0 : i32
    return %c0_i32, %c0_i32_0 : i32, i32
  }
  func.func @transform_4(%arg0: i32, %arg1: i32) -> (i32, i32, i32) {
    %c0_i32 = arith.constant 0 : i32
    %c0_i32_0 = arith.constant 0 : i32
    %c0_i32_1 = arith.constant 0 : i32
    return %arg0, %c0_i32, %c0_i32_0 : i32, i32, i32
  }
  func.func @transform_5(%arg0: i32, %arg1: i32) -> (i32, i32) {
    %c1_i32 = arith.constant 1 : i32
    %0 = arith.muli %arg0, %c1_i32 : i32
    %1 = arith.addi %0, %arg1 : i32
    %c0_i32 = arith.constant 0 : i32
    %c0_i32_0 = arith.constant 0 : i32
    return %1, %c0_i32 : i32, i32
  }
}

module attributes {stable_mosaic.version = 11 : i64} {
  func.func @_fused_linear_kernel(%arg0: i32, %arg1: i32, %arg2: i32, %arg3: memref<16x32xbf16, #tpu.memory_space<vmem>>, %arg4: memref<32x32xbf16, #tpu.memory_space<vmem>>, %arg5: memref<1x32xf32, #tpu.memory_space<vmem>>, %arg6: memref<16x32xbf16, #tpu.memory_space<vmem>>, %arg7: memref<16x32xbf16, #tpu.memory_space<vmem>>, %arg8: memref<16x32xf32, #tpu.memory_space<vmem>>) attributes {dimension_semantics = [#tpu.dimension_semantics<parallel>, #tpu.dimension_semantics<parallel>, #tpu.dimension_semantics<arbitrary>], iteration_bounds = array<i64: 1, 1, 1>, scalar_prefetch = 0 : i64, scratch_operands = 1 : i64, tpu.core_type = #tpu.core_type<tc>, window_params = [{transform_indices = @transform_0, window_bounds = array<i64: 16, 32>}, {transform_indices = @transform_1, window_bounds = array<i64: 32, 32>}, {transform_indices = @transform_2, window_bounds = array<i64: 1, 32>}, {transform_indices = @transform_3, window_bounds = array<i64: 16, 32>}, {transform_indices = @transform_4, window_bounds = array<i64: 16, 32>}]} {
    %c0_i32 = arith.constant 0 : i32
    %0 = arith.cmpi eq, %arg2, %c0_i32 : i32
    %1 = arith.extui %0 : i1 to i32
    %c0_i32_0 = arith.constant 0 : i32
    %2 = arith.cmpi ne, %1, %c0_i32_0 : i32
    scf.if %2 {
      %cst_10 = arith.constant 0.000000e+00 : f32
      %12 = vector.broadcast %cst_10 : f32 to vector<16x32xf32>
      %c0_11 = arith.constant 0 : index
      %c0_12 = arith.constant 0 : index
      %13 = vector.load %arg8[%c0_11, %c0_12] : memref<16x32xf32, #tpu.memory_space<vmem>>, vector<16x32xf32>
      tpu.vector_store %arg8[%c0_11, %c0_12], %12 {strides = array<i32>} : memref<16x32xf32, #tpu.memory_space<vmem>>, vector<16x32xf32>,
    } else {
    }
    %c0 = arith.constant 0 : index
    %c0_1 = arith.constant 0 : index
    %3 = vector.load %arg3[%c0, %c0_1] : memref<16x32xbf16, #tpu.memory_space<vmem>>, vector<16x32xbf16>
    %c0_2 = arith.constant 0 : index
    %c0_3 = arith.constant 0 : index
    %4 = vector.load %arg4[%c0_2, %c0_3] : memref<32x32xbf16, #tpu.memory_space<vmem>>, vector<32x32xbf16>
    %c0_4 = arith.constant 0 : index
    %c0_5 = arith.constant 0 : index
    %5 = vector.load %arg8[%c0_4, %c0_5] : memref<16x32xf32, #tpu.memory_space<vmem>>, vector<16x32xf32>
    %cst = arith.constant dense<0.000000e+00> : vector<16x32xf32>
    %6 = tpu.matmul %3, %4, %cst {dimension_numbers = #tpu.dot_dimension_numbers<[1], [0], [0], [1], [0, 0, 1, 1], [], []>} : vector<16x32xbf16>, vector<32x32xbf16>, vector<16x32xf32> -> vector<16x32xf32>
    %7 = arith.addf %5, %6 : vector<16x32xf32>
    %c0_6 = arith.constant 0 : index
    %c0_7 = arith.constant 0 : index
    %8 = vector.load %arg8[%c0_6, %c0_7] : memref<16x32xf32, #tpu.memory_space<vmem>>, vector<16x32xf32>
    tpu.vector_store %arg8[%c0_6, %c0_7], %7 {strides = array<i32>} : memref<16x32xf32, #tpu.memory_space<vmem>>, vector<16x32xf32>,
    %c0_i32_8 = arith.constant 0 : i32
    %9 = arith.cmpi eq, %arg2, %c0_i32_8 : i32
    %10 = arith.extui %9 : i1 to i32
    %c0_i32_9 = arith.constant 0 : i32
    %11 = arith.cmpi ne, %10, %c0_i32_9 : i32
    scf.if %11 {
      %c0_10 = arith.constant 0 : index
      %c0_11 = arith.constant 0 : index
      %12 = vector.load %arg8[%c0_10, %c0_11] : memref<16x32xf32, #tpu.memory_space<vmem>>, vector<16x32xf32>
      %c0_12 = arith.constant 0 : index
      %c0_13 = arith.constant 0 : index
      %13 = vector.load %arg5[%c0_12, %c0_13] : memref<1x32xf32, #tpu.memory_space<vmem>>, vector<1x32xf32>
      %14 = vector.broadcast %13 : vector<1x32xf32> to vector<16x32xf32>
      %15 = arith.addf %12, %14 : vector<16x32xf32>
      %c0_14 = arith.constant 0 : index
      %c0_15 = arith.constant 0 : index
      %16 = vector.load %arg6[%c0_14, %c0_15] : memref<16x32xbf16, #tpu.memory_space<vmem>>, vector<16x32xbf16>
      %17 = arith.extf %16 : vector<16x32xbf16> to vector<16x32xf32>
      %18 = arith.addf %15, %17 : vector<16x32xf32>
      %19 = arith.truncf %18 : vector<16x32xf32> to vector<16x32xbf16>
      %c0_16 = arith.constant 0 : index
      %c0_17 = arith.constant 0 : index
      %20 = vector.load %arg7[%c0_16, %c0_17] : memref<16x32xbf16, #tpu.memory_space<vmem>>, vector<16x32xbf16>
      tpu.vector_store %arg7[%c0_16, %c0_17], %19 {strides = array<i32>} : memref<16x32xbf16, #tpu.memory_space<vmem>>, vector<16x32xbf16>,
    } else {
    }
    return
  }
  func.func @transform_0(%arg0: i32, %arg1: i32, %arg2: i32) -> (i32, i32) {
    %c0_i32 = arith.constant 0 : i32
    return %arg0, %arg2 : i32, i32
  }
  func.func @transform_1(%arg0: i32, %arg1: i32, %arg2: i32) -> (i32, i32) {
    %c0_i32 = arith.constant 0 : i32
    return %arg2, %arg1 : i32, i32
  }
  func.func @transform_2(%arg0: i32, %arg1: i32, %arg2: i32) -> (i32, i32) {
    %c0_i32 = arith.constant 0 : i32
    %c0_i32_0 = arith.constant 0 : i32
    return %c0_i32, %arg1 : i32, i32
  }
  func.func @transform_3(%arg0: i32, %arg1: i32, %arg2: i32) -> (i32, i32) {
    %c0_i32 = arith.constant 0 : i32
    return %arg0, %arg1 : i32, i32
  }
  func.func @transform_4(%arg0: i32, %arg1: i32, %arg2: i32) -> (i32, i32) {
    %c0_i32 = arith.constant 0 : i32
    return %arg0, %arg1 : i32, i32
  }
}

module attributes {stable_mosaic.version = 11 : i64} {
  func.func @_fused_linear_kernel(%arg0: i32, %arg1: i32, %arg2: i32, %arg3: memref<16x32xbf16, #tpu.memory_space<vmem>>, %arg4: memref<1x32xf32, #tpu.memory_space<vmem>>, %arg5: memref<1x32xf32, #tpu.memory_space<vmem>>, %arg6: memref<32x128xbf16, #tpu.memory_space<vmem>>, %arg7: memref<1x128xf32, #tpu.memory_space<vmem>>, %arg8: memref<16x128xbf16, #tpu.memory_space<vmem>>, %arg9: memref<16x128xf32, #tpu.memory_space<vmem>>, %arg10: memref<16x32xbf16, #tpu.memory_space<vmem>>) attributes {dimension_semantics = [#tpu.dimension_semantics<parallel>, #tpu.dimension_semantics<arbitrary>, #tpu.dimension_semantics<arbitrary>], iteration_bounds = array<i64: 1, 1, 1>, scalar_prefetch = 0 : i64, scratch_operands = 2 : i64, tpu.core_type = #tpu.core_type<tc>, window_params = [{transform_indices = @transform_0, window_bounds = array<i64: 16, 32>}, {transform_indices = @transform_1, window_bounds = array<i64: 1, 32>}, {transform_indices = @transform_2, window_bounds = array<i64: 1, 32>}, {transform_indices = @transform_3, window_bounds = array<i64: 32, 128>}, {transform_indices = @transform_4, window_bounds = array<i64: 1, 128>}, {transform_indices = @transform_5, window_bounds = array<i64: 16, 128>}]} {
    %c0_i32 = arith.constant 0 : i32
    %0 = arith.cmpi eq, %arg2, %c0_i32 : i32
    %1 = arith.extui %0 : i1 to i32
    %c0_i32_0 = arith.constant 0 : i32
    %2 = arith.cmpi ne, %1, %c0_i32_0 : i32
    scf.if %2 {
      %cst_12 = arith.constant 0.000000e+00 : f32
      %15 = vector.broadcast %cst_12 : f32 to vector<16x128xf32>
      %c0_13 = arith.constant 0 : index
      %c0_14 = arith.constant 0 : index
      %16 = vector.load %arg9[%c0_13, %c0_14] : memref<16x128xf32, #tpu.memory_space<vmem>>, vector<16x128xf32>
      tpu.vector_store %arg9[%c0_13, %c0_14], %15 {strides = array<i32>} : memref<16x128xf32, #tpu.memory_space<vmem>>, vector<16x128xf32>,
    } else {
    }
    %c0_i32_1 = arith.constant 0 : i32
    %3 = arith.cmpi eq, %arg1, %c0_i32_1 : i32
    %4 = arith.extui %3 : i1 to i32
    %c0_i32_2 = arith.constant 0 : i32
    %5 = arith.cmpi ne, %4, %c0_i32_2 : i32
    scf.if %5 {
      %c0_12 = arith.constant 0 : index
      %c0_13 = arith.constant 0 : index
      %15 = vector.load %arg3[%c0_12, %c0_13] : memref<16x32xbf16, #tpu.memory_space<vmem>>, vector<16x32xbf16>
      %16 = arith.extf %15 : vector<16x32xbf16> to vector<16x32xf32>
      %cst_14 = arith.constant dense<0.000000e+00> : vector<16xf32>
      %17 = vector.multi_reduction <add>, %16, %cst_14 [1] : vector<16x32xf32> to vector<16xf32>
      %18 = vector.shape_cast %17 : vector<16xf32> to vector<16x1xf32>
      %cst_15 = arith.constant 3.200000e+01 : f32
      %19 = vector.broadcast %cst_15 : f32 to vector<16x1xf32>
      %20 = arith.divf %18, %19 : vector<16x1xf32>
      %21 = vector.broadcast %20 : vector<16x1xf32> to vector<16x32xf32>
      %22 = arith.subf %16, %21 : vector<16x32xf32>
      %23 = arith.mulf %22, %22 : vector<16x32xf32>
      %cst_16 = arith.constant dense<0.000000e+00> : vector<16xf32>
      %24 = vector.multi_reduction <add>, %23, %cst_16 [1] : vector<16x32xf32> to vector<16xf32>
      %25 = vector.shape_cast %24 : vector<16xf32> to vector<16x1xf32>
      %cst_17 = arith.constant 3.200000e+01 : f32
      %26 = vector.broadcast %cst_17 : f32 to vector<16x1xf32>
      %27 = arith.divf %25, %26 : vector<16x1xf32>
      %28 = vector.broadcast %20 : vector<16x1xf32> to vector<16x32xf32>
      %29 = arith.subf %16, %28 : vector<16x32xf32>
      %cst_18 = arith.constant 9.99999997E-7 : f32
      %30 = vector.broadcast %cst_18 : f32 to vector<16x1xf32>
      %31 = arith.addf %27, %30 : vector<16x1xf32>
      %32 = math.rsqrt %31 : vector<16x1xf32>
      %33 = vector.broadcast %32 : vector<16x1xf32> to vector<16x32xf32>
      %34 = arith.mulf %29, %33 : vector<16x32xf32>
      %c0_19 = arith.constant 0 : index
      %c0_20 = arith.constant 0 : index
      %35 = vector.load %arg4[%c0_19, %c0_20] : memref<1x32xf32, #tpu.memory_space<vmem>>, vector<1x32xf32>
      %36 = vector.broadcast %35 : vector<1x32xf32> to vector<16x32xf32>
      %37 = arith.mulf %34, %36 : vector<16x32xf32>
      %c0_21 = arith.constant 0 : index
      %c0_22 = arith.constant 0 : index
      %38 = vector.load %arg5[%c0_21, %c0_22] : memref<1x32xf32, #tpu.memory_space<vmem>>, vector<1x32xf32>
      %39 = vector.broadcast %38 : vector<1x32xf32> to vector<16x32xf32>
      %40 = arith.addf %37, %39 : vector<16x32xf32>
      %41 = arith.truncf %40 : vector<16x32xf32> to vector<16x32xbf16>
      %c0_23 = arith.constant 0 : index
      %c0_24 = arith.constant 0 : index
      %42 = vector.load %arg10[%c0_23, %c0_24] : memref<16x32xbf16, #tpu.memory_space<vmem>>, vector<16x32xbf16>
      tpu.vector_store %arg10[%c0_23, %c0_24], %41 {strides = array<i32>} : memref<16x32xbf16, #tpu.memory_space<vmem>>, vector<16x32xbf16>,
    } else {
    }
    %c0 = arith.constant 0 : index
    %c0_3 = arith.constant 0 : index
    %6 = vector.load %arg10[%c0, %c0_3] : memref<16x32xbf16, #tpu.memory_space<vmem>>, vector<16x32xbf16>
    %c0_4 = arith.constant 0 : index
    %c0_5 = arith.constant 0 : index
    %7 = vector.load %arg6[%c0_4, %c0_5] : memref<32x128xbf16, #tpu.memory_space<vmem>>, vector<32x128xbf16>
    %c0_6 = arith.constant 0 : index
    %c0_7 = arith.constant 0 : index
    %8 = vector.load %arg9[%c0_6, %c0_7] : memref<16x128xf32, #tpu.memory_space<vmem>>, vector<16x128xf32>
    %cst = arith.constant dense<0.000000e+00> : vector<16x128xf32>
    %9 = tpu.matmul %6, %7, %cst {dimension_numbers = #tpu.dot_dimension_numbers<[1], [0], [0], [1], [0, 0, 1, 1], [], []>} : vector<16x32xbf16>, vector<32x128xbf16>, vector<16x128xf32> -> vector<16x128xf32>
    %10 = arith.addf %8, %9 : vector<16x128xf32>
    %c0_8 = arith.constant 0 : index
    %c0_9 = arith.constant 0 : index
    %11 = vector.load %arg9[%c0_8, %c0_9] : memref<16x128xf32, #tpu.memory_space<vmem>>, vector<16x128xf32>
    tpu.vector_store %arg9[%c0_8, %c0_9], %10 {strides = array<i32>} : memref<16x128xf32, #tpu.memory_space<vmem>>, vector<16x128xf32>,
    %c0_i32_10 = arith.constant 0 : i32
    %12 = arith.cmpi eq, %arg2, %c0_i32_10 : i32
    %13 = arith.extui %12 : i1 to i32
    %c0_i32_11 = arith.constant 0 : i32
    %14 = arith.cmpi ne, %13, %c0_i32_11 : i32
    scf.if %14 {
      %c0_12 = arith.constant 0 : index
      %c0_13 = arith.constant 0 : index
      %15 = vector.load %arg9[%c0_12, %c0_13] : memref<16x128xf32, #tpu.memory_space<vmem>>, vector<16x128xf32>
      %c0_14 = arith.constant 0 : index
      %c0_15 = arith.constant 0 : index
      %16 = vector.load %arg7[%c0_14, %c0_15] : memref<1x128xf32, #tpu.memory_space<vmem>>, vector<1x128xf32>
      %17 = vector.broadcast %16 : vector<1x128xf32> to vector<16x128xf32>
      %18 = arith.addf %15, %17 : vector<16x128xf32>
      %cst_16 = arith.constant 5.000000e-01 : f32
      %19 = vector.broadcast %cst_16 : f32 to vector<16x128xf32>
      %20 = arith.mulf %19, %18 : vector<16x128xf32>
      %cst_17 = arith.constant 4.471500e-02 : f32
      %21 = vector.broadcast %cst_17 : f32 to vector<16x128xf32>
      %22 = arith.mulf %21, %18 : vector<16x128xf32>
      %23 = arith.mulf %22, %18 : vector<16x128xf32>
      %24 = arith.mulf %23, %18 : vector<16x128xf32>
      %25 = arith.addf %18, %24 : vector<16x128xf32>
      %cst_18 = arith.constant 0.797884583 : f32
      %26 = vector.broadcast %cst_18 : f32 to vector<16x128xf32>
      %27 = arith.mulf %26, %25 : vector<16x128xf32>
      %28 = math.tanh %27 : vector<16x128xf32>
      %cst_19 = arith.constant 1.000000e+00 : f32
      %29 = vector.broadcast %cst_19 : f32 to vector<16x128xf32>
      %30 = arith.addf %29, %28 : vector<16x128xf32>
      %31 = arith.mulf %20, %30 : vector<16x128xf32>
      %32 = arith.truncf %31 : vector<16x128xf32> to vector<16x128xbf16>
      %c0_20 = arith.constant 0 : index
      %c0_21 = arith.constant 0 : index
      %33 = vector.load %arg8[%c0_20, %c0_21] : memref<16x128xbf16, #tpu.memory_space<vmem>>, vector<16x128xbf16>
      tpu.vector_store %arg8[%c0_20, %c0_21], %32 {strides = array<i32>} : memref<16x128xbf16, #tpu.memory_space<vmem>>, vector<16x128xbf16>,
    } else {
    }
    return
  }
  func.func @transform_0(%arg0: i32, %arg1: i32, %arg2: i32) -> (i32, i32) {
    %c0_i32 = arith.constant 0 : i32
    return %arg0, %arg2 : i32, i32
  }
  func.func @transform_1(%arg0: i32, %arg1: i32, %arg2: i32) -> (i32, i32) {
    %c0_i32 = arith.constant 0 : i32
    %c0_i32_0 = arith.constant 0 : i32
    return %c0_i32, %arg2 : i32, i32
  }
  func.func @transform_2(%arg0: i32, %arg1: i32, %arg2: i32) -> (i32, i32) {
    %c0_i32 = arith.constant 0 : i32
    %c0_i32_0 = arith.constant 0 : i32
    return %c0_i32, %arg2 : i32, i32
  }
  func.func @transform_3(%arg0: i32, %arg1: i32, %arg2: i32) -> (i32, i32) {
    %c0_i32 = arith.constant 0 : i32
    return %arg2, %arg1 : i32, i32
  }
  func.func @transform_4(%arg0: i32, %arg1: i32, %arg2: i32) -> (i32, i32) {
    %c0_i32 = arith.constant 0 : i32
    %c0_i32_0 = arith.constant 0 : i32
    return %c0_i32, %arg1 : i32, i32
  }
  func.func @transform_5(%arg0: i32, %arg1: i32, %arg2: i32) -> (i32, i32) {
    %c0_i32 = arith.constant 0 : i32
    return %arg0, %arg1 : i32, i32
  }
}

module attributes {stable_mosaic.version = 11 : i64} {
  func.func @_fused_linear_kernel(%arg0: i32, %arg1: i32, %arg2: i32, %arg3: memref<16x128xbf16, #tpu.memory_space<vmem>>, %arg4: memref<128x32xbf16, #tpu.memory_space<vmem>>, %arg5: memref<1x32xf32, #tpu.memory_space<vmem>>, %arg6: memref<16x32xbf16, #tpu.memory_space<vmem>>, %arg7: memref<16x32xbf16, #tpu.memory_space<vmem>>, %arg8: memref<16x32xf32, #tpu.memory_space<vmem>>) attributes {dimension_semantics = [#tpu.dimension_semantics<parallel>, #tpu.dimension_semantics<parallel>, #tpu.dimension_semantics<arbitrary>], iteration_bounds = array<i64: 1, 1, 1>, scalar_prefetch = 0 : i64, scratch_operands = 1 : i64, tpu.core_type = #tpu.core_type<tc>, window_params = [{transform_indices = @transform_0, window_bounds = array<i64: 16, 128>}, {transform_indices = @transform_1, window_bounds = array<i64: 128, 32>}, {transform_indices = @transform_2, window_bounds = array<i64: 1, 32>}, {transform_indices = @transform_3, window_bounds = array<i64: 16, 32>}, {transform_indices = @transform_4, window_bounds = array<i64: 16, 32>}]} {
    %c0_i32 = arith.constant 0 : i32
    %0 = arith.cmpi eq, %arg2, %c0_i32 : i32
    %1 = arith.extui %0 : i1 to i32
    %c0_i32_0 = arith.constant 0 : i32
    %2 = arith.cmpi ne, %1, %c0_i32_0 : i32
    scf.if %2 {
      %cst_10 = arith.constant 0.000000e+00 : f32
      %12 = vector.broadcast %cst_10 : f32 to vector<16x32xf32>
      %c0_11 = arith.constant 0 : index
      %c0_12 = arith.constant 0 : index
      %13 = vector.load %arg8[%c0_11, %c0_12] : memref<16x32xf32, #tpu.memory_space<vmem>>, vector<16x32xf32>
      tpu.vector_store %arg8[%c0_11, %c0_12], %12 {strides = array<i32>} : memref<16x32xf32, #tpu.memory_space<vmem>>, vector<16x32xf32>,
    } else {
    }
    %c0 = arith.constant 0 : index
    %c0_1 = arith.constant 0 : index
    %3 = vector.load %arg3[%c0, %c0_1] : memref<16x128xbf16, #tpu.memory_space<vmem>>, vector<16x128xbf16>
    %c0_2 = arith.constant 0 : index
    %c0_3 = arith.constant 0 : index
    %4 = vector.load %arg4[%c0_2, %c0_3] : memref<128x32xbf16, #tpu.memory_space<vmem>>, vector<128x32xbf16>
    %c0_4 = arith.constant 0 : index
    %c0_5 = arith.constant 0 : index
    %5 = vector.load %arg8[%c0_4, %c0_5] : memref<16x32xf32, #tpu.memory_space<vmem>>, vector<16x32xf32>
    %cst = arith.constant dense<0.000000e+00> : vector<16x32xf32>
    %6 = tpu.matmul %3, %4, %cst {dimension_numbers = #tpu.dot_dimension_numbers<[1], [0], [0], [1], [0, 0, 1, 1], [], []>} : vector<16x128xbf16>, vector<128x32xbf16>, vector<16x32xf32> -> vector<16x32xf32>
    %7 = arith.addf %5, %6 : vector<16x32xf32>
    %c0_6 = arith.constant 0 : index
    %c0_7 = arith.constant 0 : index
    %8 = vector.load %arg8[%c0_6, %c0_7] : memref<16x32xf32, #tpu.memory_space<vmem>>, vector<16x32xf32>
    tpu.vector_store %arg8[%c0_6, %c0_7], %7 {strides = array<i32>} : memref<16x32xf32, #tpu.memory_space<vmem>>, vector<16x32xf32>,
    %c0_i32_8 = arith.constant 0 : i32
    %9 = arith.cmpi eq, %arg2, %c0_i32_8 : i32
    %10 = arith.extui %9 : i1 to i32
    %c0_i32_9 = arith.constant 0 : i32
    %11 = arith.cmpi ne, %10, %c0_i32_9 : i32
    scf.if %11 {
      %c0_10 = arith.constant 0 : index
      %c0_11 = arith.constant 0 : index
      %12 = vector.load %arg8[%c0_10, %c0_11] : memref<16x32xf32, #tpu.memory_space<vmem>>, vector<16x32xf32>
      %c0_12 = arith.constant 0 : index
      %c0_13 = arith.constant 0 : index
      %13 = vector.load %arg5[%c0_12, %c0_13] : memref<1x32xf32, #tpu.memory_space<vmem>>, vector<1x32xf32>
      %14 = vector.broadcast %13 : vector<1x32xf32> to vector<16x32xf32>
      %15 = arith.addf %12, %14 : vector<16x32xf32>
      %c0_14 = arith.constant 0 : index
      %c0_15 = arith.constant 0 : index
      %16 = vector.load %arg6[%c0_14, %c0_15] : memref<16x32xbf16, #tpu.memory_space<vmem>>, vector<16x32xbf16>
      %17 = arith.extf %16 : vector<16x32xbf16> to vector<16x32xf32>
      %18 = arith.addf %15, %17 : vector<16x32xf32>
      %19 = arith.truncf %18 : vector<16x32xf32> to vector<16x32xbf16>
      %c0_16 = arith.constant 0 : index
      %c0_17 = arith.constant 0 : index
      %20 = vector.load %arg7[%c0_16, %c0_17] : memref<16x32xbf16, #tpu.memory_space<vmem>>, vector<16x32xbf16>
      tpu.vector_store %arg7[%c0_16, %c0_17], %19 {strides = array<i32>} : memref<16x32xbf16, #tpu.memory_space<vmem>>, vector<16x32xbf16>,
    } else {
    }
    return
  }
  func.func @transform_0(%arg0: i32, %arg1: i32, %arg2: i32) -> (i32, i32) {
    %c0_i32 = arith.constant 0 : i32
    return %arg0, %arg2 : i32, i32
  }
  func.func @transform_1(%arg0: i32, %arg1: i32, %arg2: i32) -> (i32, i32) {
    %c0_i32 = arith.constant 0 : i32
    return %arg2, %arg1 : i32, i32
  }
  func.func @transform_2(%arg0: i32, %arg1: i32, %arg2: i32) -> (i32, i32) {
    %c0_i32 = arith.constant 0 : i32
    %c0_i32_0 = arith.constant 0 : i32
    return %c0_i32, %arg1 : i32, i32
  }
  func.func @transform_3(%arg0: i32, %arg1: i32, %arg2: i32) -> (i32, i32) {
    %c0_i32 = arith.constant 0 : i32
    return %arg0, %arg1 : i32, i32
  }
  func.func @transform_4(%arg0: i32, %arg1: i32, %arg2: i32) -> (i32, i32) {
    %c0_i32 = arith.constant 0 : i32
    return %arg0, %arg1 : i32, i32
  }
}

</mosaic_0001>

<llo_original>
// kernel: bert_forward.14
$region0: #{bert_forward.14}
  #allocation0 [shape = 'u32[]', space=smem, size = 0x4, offset = 0x4, fixed_abs, tag = 'smem constant byte address 0x4 - core index']
  #allocation1 [shape = 'u32[144,128]{1,0:T(1,128)}', space=vmem, size = 0x12000, scoped, tag = 'internal scratch']
  #allocation2 [shape = 'f32[16,32]{1,0:T(8,128)}', space=vmem, size = 0x2000, scoped, tag = 'scratch operand']
  %s0 = inlined_call_operand.vmem [shape: bf16[16,32], index: 0, kind: input, shape index: {}]
  %s1 = inlined_call_operand.vmem [shape: bf16[32,32], index: 1, kind: input, shape index: {}]
  %s2 = inlined_call_operand.vmem [shape: f32[1,32], index: 2, kind: input, shape index: {}]
  %s3 = inlined_call_operand.vmem [shape: bf16[16,32], index: 3, kind: input, shape index: {}]
  %s4 = inlined_call_operand.vmem [shape: bf16[16,32], index: 4, kind: output, shape index: {}]
  %s5 = sld [smem:[#allocation0]]
  $region34: #{bert_forward.14} parent=0
    _
  %s7 = ssub.s32 1, %s5
  %s8 = scalar_select 0, %s7, %s5
  // Predicated region
  $region2: #{bert_forward.14} parent=0 // pred_check
    _
  $region3: #{bert_forward.14} parent=0 // pred_check_branch
    %10 = sbr.rel (0) target = $region5
  $region4: #{bert_forward.14} parent=0 // pred_region
    _
  $region5: #{bert_forward.14} parent=0 // pred_fallthru
    _
  // Predicated region
  $region6: #{bert_forward.14} parent=0 // pred_check
    _
  $region7: #{bert_forward.14} parent=0 // pred_check_branch
    %12 = sbr.rel (0) target = $region9
  $region8: #{bert_forward.14} parent=0 // pred_region
    _
  $region9: #{bert_forward.14} parent=0 // pred_fallthru
    _
  // Predicated region
  $region10: #{bert_forward.14} parent=0 // pred_check
    _
  $region11: #{bert_forward.14} parent=0 // pred_check_branch
    %14 = sbr.rel (0) target = $region13
  $region12: #{bert_forward.14} parent=0 // pred_region
    _
  $region13: #{bert_forward.14} parent=0 // pred_fallthru
    _
  // Predicated region
  $region14: #{bert_forward.14} parent=0 // pred_check
    _
  $region15: #{bert_forward.14} parent=0 // pred_check_branch
    %16 = sbr.rel (0) target = $region17
  $region16: #{bert_forward.14} parent=0 // pred_region
    _
  $region17: #{bert_forward.14} parent=0 // pred_fallthru
    _
  %p18 = scmp.eq.s32.totalorder 0, 0
  // Predicated region
  $region18: #{bert_forward.14} parent=0 // pred_check
    %p19 = pneg %p18
  $region19: #{bert_forward.14} parent=0 // pred_check_branch
    %21 = sbr.rel (%p19) target = $region21
  $region20: #{bert_forward.14} parent=0 // pred_region
    %vm22 = vcmask 261120
    %23 = vst.msk [vmem:[#allocation2] sm:$0xff] %vm22, 0.0
    %24 = vst.msk [vmem:[#allocation2 + $0x8] sm:$0xff] %vm22, 0.0
  $region21: #{bert_forward.14} parent=0 // pred_fallthru
    _
  %v25 = vld [vmem:[%s0] sm:$0xf]
  %v26 = vld [vmem:[%s0 + $0x4] sm:$0xf]
  %v27 = vld [vmem:[%s1] sm:$0xf]
  %v28 = vld [vmem:[%s1 + $0x4] sm:$0xf]
  %v29 = vld [vmem:[%s1 + $0x8] sm:$0xf]
  %v30 = vld [vmem:[%s1 + $0xc] sm:$0xf]
  %v31 = vld [vmem:[#allocation2] sm:$0xff]
  %v32 = vld [vmem:[#allocation2 + $0x8] sm:$0xff]
  %v35 = vunpack.c.l.b16 %v25
  %v36 = vunpack.c.l.b16 %v26
  %v37 = vpack.c.b16 %v36, %v35
  %v42 = vunpack.c.l.b16 %v27
  %v43 = vunpack.c.l.b16 %v28
  %v44 = vunpack.c.l.b16 %v29
  %v45 = vunpack.c.l.b16 %v30
  %v46 = vpack.c.b16 %v43, %v42
  %v47 = vpack.c.b16 %v45, %v44
  %vm50 = vcmask 261120
  %v52 = vsel %vm50, %v37, 0
  %54 = vmatprep.subr.bf16.mxu0 0
  %55 = vmatpush1.bf16.msra.mxu0 %v46
  %56 = vmatprep.subr.bf16.mxu0 0
  %57 = vmatpush1.bf16.msra.mxu0 %v47
  %58 = vmatprep.subr.bf16.mxu0 0
  %59 = vmatpush1.bf16.msra.mxu0 0
  %60 = vmatprep.subr.bf16.mxu0 0
  %61 = vmatpush1.bf16.msra.mxu0 0
  %62 = vmatprep.subr.bf16.mxu0 0
  %63 = vmatpush1.bf16.msra.mxu0 0
  %64 = vmatprep.subr.bf16.mxu0 0
  %65 = vmatpush1.bf16.msra.mxu0 0
  %66 = vmatprep.subr.bf16.mxu0 0
  %67 = vmatpush1.bf16.msra.mxu0 0
  %68 = vmatprep.subr.bf16.mxu0 0
  %69 = vmatpush1.bf16.msra.mxu0 0
  %70 = vmatprep.subr.bf16.mxu0 0
  %71 = vmatpush1.bf16.msra.mxu0 0
  %72 = vmatprep.subr.bf16.mxu0 0
  %73 = vmatpush1.bf16.msra.mxu0 0
  %74 = vmatprep.subr.bf16.mxu0 0
  %75 = vmatpush1.bf16.msra.mxu0 0
  %76 = vmatprep.subr.bf16.mxu0 0
  %77 = vmatpush1.bf16.msra.mxu0 0
  %78 = vmatprep.subr.bf16.mxu0 0
  %79 = vmatpush1.bf16.msra.mxu0 0
  %80 = vmatprep.subr.bf16.mxu0 0
  %81 = vmatpush1.bf16.msra.mxu0 0
  %82 = vmatprep.subr.bf16.mxu0 0
  %83 = vmatpush1.bf16.msra.mxu0 0
  %84 = vmatprep.subr.bf16.mxu0 0
  %85 = vmatpush1.bf16.msra.mxu0 0
  %86 = vmatprep.mubr.bf16.mxu0 0
  %87 = vmatmul.mubr.bf16.gmra.mrb[0].mxu0 %v52
  %v88 = vpop.f32.mrb[0].mxu0
  %v89 = vadd.f32 0.0, %v88
  %v90 = vpop.f32.mrb[0].mxu0
  %v91 = vpop.f32.mrb[0].mxu0
  %v92 = vadd.f32 0.0, %v91
  %v93 = vpop.f32.mrb[0].mxu0
  %94 = vdwg.mxu0
  %v95 = vadd.f32 %v31, %v89
  %v96 = vadd.f32 %v32, %v92
  %97 = vst.msk [vmem:[#allocation2] sm:$0xff] %vm50, %v95
  %98 = vst.msk [vmem:[#allocation2 + $0x8] sm:$0xff] %vm50, %v96
  // Predicated region
  $region22: #{bert_forward.14} parent=0 // pred_check
    %p99 = pneg %p18
  $region23: #{bert_forward.14} parent=0 // pred_check_branch
    %101 = sbr.rel (%p99) target = $region25
  $region24: #{bert_forward.14} parent=0 // pred_region
    %v102 = vld [vmem:[#allocation2] sm:$0xff]
    %v103 = vld [vmem:[#allocation2 + $0x8] sm:$0xff]
    %v104 = vld [vmem:[%s2] sm:$0x1]
    %v106 = vlaneseq
    %v107 = vshrl.u32 %v106, 7
    %v108 = vsub.s32 0, %v107
    %v109 = vrot.slane %v104, %v108
    %v111 = vadd.f32 %v102, %v109
    %v112 = vadd.f32 %v103, %v109
    %v113 = vld [vmem:[%s3] sm:$0xf]
    %v114 = vld [vmem:[%s3 + $0x4] sm:$0xf]
    %v115 = vunpack.c.l.bf16 %v113
    %v116 = vunpack.c.l.bf16 %v114
    %v117 = vadd.f32 %v111, %v115
    %v118 = vadd.f32 %v112, %v116
    %v119 = vpack.c.bf16 %v118, %v117
    %v121 = vunpack.c.l.b16 %v119
    %v122 = vunpack.c.h.b16 %v119
    %v123 = vpack.c.b16 %v121, %v121
    %v124 = vpack.c.b16 %v122, %v122
    %vm127 = vcmask 257024
    %128 = vst.msk [vmem:[%s4] sm:$0xf] %vm127, %v123
    %129 = vst.msk [vmem:[%s4 + $0x4] sm:$0xf] %vm127, %v124
  $region25: #{bert_forward.14} parent=0 // pred_fallthru
    _
  // Predicated region
  $region26: #{bert_forward.14} parent=0 // pred_check
    _
  $region27: #{bert_forward.14} parent=0 // pred_check_branch
    %131 = sbr.rel (0) target = $region29
  $region28: #{bert_forward.14} parent=0 // pred_region
    _
  $region29: #{bert_forward.14} parent=0 // pred_fallthru
    _
  // Predicated region
  $region30: #{bert_forward.14} parent=0 // pred_check
    _
  $region31: #{bert_forward.14} parent=0 // pred_check_branch
    %133 = sbr.rel (0) target = $region33
  $region32: #{bert_forward.14} parent=0 // pred_region
    _
  $region33: #{bert_forward.14} parent=0 // pred_fallthru
    _

// kernel: bert_forward.11
$region0: #{bert_forward.11}
  #allocation0 [shape = 'u32[]', space=smem, size = 0x4, offset = 0x4, fixed_abs, tag = 'smem constant byte address 0x4 - core index']
  #allocation1 [shape = 'u32[144,128]{1,0:T(1,128)}', space=vmem, size = 0x12000, scoped, tag = 'internal scratch']
  #allocation2 [shape = 'f32[16,64]{1,0:T(8,128)}', space=vmem, size = 0x2000, scoped, tag = 'scratch operand']
  %s0 = inlined_call_operand.vmem [shape: bf16[16,32], index: 0, kind: input, shape index: {}]
  %s1 = inlined_call_operand.vmem [shape: bf16[32,64], index: 1, kind: input, shape index: {}]
  %s2 = inlined_call_operand.vmem [shape: f32[1,64], index: 2, kind: input, shape index: {}]
  %s3 = inlined_call_operand.vmem [shape: bf16[16,64], index: 3, kind: output, shape index: {}]
  %s4 = sld [smem:[#allocation0]]
  $region30: #{bert_forward.11} parent=0
    _
  %s6 = ssub.s32 1, %s4
  %s7 = scalar_select 0, %s6, %s4
  // Predicated region
  $region2: #{bert_forward.11} parent=0 // pred_check
    _
  $region3: #{bert_forward.11} parent=0 // pred_check_branch
    %9 = sbr.rel (0) target = $region5
  $region4: #{bert_forward.11} parent=0 // pred_region
    _
  $region5: #{bert_forward.11} parent=0 // pred_fallthru
    _
  // Predicated region
  $region6: #{bert_forward.11} parent=0 // pred_check
    _
  $region7: #{bert_forward.11} parent=0 // pred_check_branch
    %11 = sbr.rel (0) target = $region9
  $region8: #{bert_forward.11} parent=0 // pred_region
    _
  $region9: #{bert_forward.11} parent=0 // pred_fallthru
    _
  // Predicated region
  $region10: #{bert_forward.11} parent=0 // pred_check
    _
  $region11: #{bert_forward.11} parent=0 // pred_check_branch
    %13 = sbr.rel (0) target = $region13
  $region12: #{bert_forward.11} parent=0 // pred_region
    _
  $region13: #{bert_forward.11} parent=0 // pred_fallthru
    _
  %p15 = scmp.eq.s32.totalorder 0, 0
  // Predicated region
  $region14: #{bert_forward.11} parent=0 // pred_check
    %p16 = pneg %p15
  $region15: #{bert_forward.11} parent=0 // pred_check_branch
    %18 = sbr.rel (%p16) target = $region17
  $region16: #{bert_forward.11} parent=0 // pred_region
    %vm19 = vcmask 523264
    %20 = vst.msk [vmem:[#allocation2] sm:$0xff] %vm19, 0.0
    %21 = vst.msk [vmem:[#allocation2 + $0x8] sm:$0xff] %vm19, 0.0
  $region17: #{bert_forward.11} parent=0 // pred_fallthru
    _
  %v22 = vld [vmem:[%s0] sm:$0xf]
  %v23 = vld [vmem:[%s0 + $0x4] sm:$0xf]
  %v24 = vld [vmem:[%s1] sm:$0xf]
  %v25 = vld [vmem:[%s1 + $0x4] sm:$0xf]
  %v26 = vld [vmem:[%s1 + $0x8] sm:$0xf]
  %v27 = vld [vmem:[%s1 + $0xc] sm:$0xf]
  %v28 = vld [vmem:[#allocation2] sm:$0xff]
  %v29 = vld [vmem:[#allocation2 + $0x8] sm:$0xff]
  %v32 = vunpack.c.l.b16 %v22
  %v33 = vunpack.c.l.b16 %v23
  %v34 = vpack.c.b16 %v33, %v32
  %v39 = vunpack.c.l.b16 %v24
  %v40 = vunpack.c.l.b16 %v25
  %v41 = vunpack.c.l.b16 %v26
  %v42 = vunpack.c.l.b16 %v27
  %v43 = vpack.c.b16 %v40, %v39
  %v44 = vpack.c.b16 %v42, %v41
  %vm47 = vcmask 261120
  %v49 = vsel %vm47, %v34, 0
  %51 = vmatprep.subr.bf16.mxu0 0
  %52 = vmatpush1.bf16.msra.mxu0 %v43
  %53 = vmatprep.subr.bf16.mxu0 0
  %54 = vmatpush1.bf16.msra.mxu0 %v44
  %55 = vmatprep.subr.bf16.mxu0 0
  %56 = vmatpush1.bf16.msra.mxu0 0
  %57 = vmatprep.subr.bf16.mxu0 0
  %58 = vmatpush1.bf16.msra.mxu0 0
  %59 = vmatprep.subr.bf16.mxu0 0
  %60 = vmatpush1.bf16.msra.mxu0 0
  %61 = vmatprep.subr.bf16.mxu0 0
  %62 = vmatpush1.bf16.msra.mxu0 0
  %63 = vmatprep.subr.bf16.mxu0 0
  %64 = vmatpush1.bf16.msra.mxu0 0
  %65 = vmatprep.subr.bf16.mxu0 0
  %66 = vmatpush1.bf16.msra.mxu0 0
  %67 = vmatprep.subr.bf16.mxu0 0
  %68 = vmatpush1.bf16.msra.mxu0 0
  %69 = vmatprep.subr.bf16.mxu0 0
  %70 = vmatpush1.bf16.msra.mxu0 0
  %71 = vmatprep.subr.bf16.mxu0 0
  %72 = vmatpush1.bf16.msra.mxu0 0
  %73 = vmatprep.subr.bf16.mxu0 0
  %74 = vmatpush1.bf16.msra.mxu0 0
  %75 = vmatprep.subr.bf16.mxu0 0
  %76 = vmatpush1.bf16.msra.mxu0 0
  %77 = vmatprep.subr.bf16.mxu0 0
  %78 = vmatpush1.bf16.msra.mxu0 0
  %79 = vmatprep.subr.bf16.mxu0 0
  %80 = vmatpush1.bf16.msra.mxu0 0
  %81 = vmatprep.subr.bf16.mxu0 0
  %82 = vmatpush1.bf16.msra.mxu0 0
  %83 = vmatprep.mubr.bf16.mxu0 0
  %84 = vmatmul.mubr.bf16.gmra.mrb[0].mxu0 %v49
  %v85 = vpop.f32.mrb[0].mxu0
  %v86 = vadd.f32 0.0, %v85
  %v87 = vpop.f32.mrb[0].mxu0
  %v88 = vpop.f32.mrb[0].mxu0
  %v89 = vadd.f32 0.0, %v88
  %v90 = vpop.f32.mrb[0].mxu0
  %91 = vdwg.mxu0
  %v92 = vadd.f32 %v28, %v86
  %v93 = vadd.f32 %v29, %v89
  %vm94 = vcmask 523264
  %95 = vst.msk [vmem:[#allocation2] sm:$0xff] %vm94, %v92
  %96 = vst.msk [vmem:[#allocation2 + $0x8] sm:$0xff] %vm94, %v93
  // Predicated region
  $region18: #{bert_forward.11} parent=0 // pred_check
    %p97 = pneg %p15
  $region19: #{bert_forward.11} parent=0 // pred_check_branch
    %99 = sbr.rel (%p97) target = $region21
  $region20: #{bert_forward.11} parent=0 // pred_region
    %v100 = vld [vmem:[#allocation2] sm:$0xff]
    %v101 = vld [vmem:[#allocation2 + $0x8] sm:$0xff]
    %v102 = vld [vmem:[%s2] sm:$0x1]
    %v104 = vlaneseq
    %v105 = vshrl.u32 %v104, 7
    %v106 = vsub.s32 0, %v105
    %v107 = vrot.slane %v102, %v106
    %v109 = vadd.f32 %v100, %v107
    %v110 = vadd.f32 %v101, %v107
    %v111 = vpack.c.bf16 %v110, %v109
    %v113 = vunpack.c.l.b16 %v111
    %v114 = vunpack.c.h.b16 %v111
    %v115 = vpack.c.b16 %v113, %v113
    %v116 = vpack.c.b16 %v114, %v114
    %vm119 = vcmask 519168
    %120 = vst.msk [vmem:[%s3] sm:$0xf] %vm119, %v115
    %121 = vst.msk [vmem:[%s3 + $0x4] sm:$0xf] %vm119, %v116
  $region21: #{bert_forward.11} parent=0 // pred_fallthru
    _
  // Predicated region
  $region22: #{bert_forward.11} parent=0 // pred_check
    _
  $region23: #{bert_forward.11} parent=0 // pred_check_branch
    %123 = sbr.rel (0) target = $region25
  $region24: #{bert_forward.11} parent=0 // pred_region
    _
  $region25: #{bert_forward.11} parent=0 // pred_fallthru
    _
  // Predicated region
  $region26: #{bert_forward.11} parent=0 // pred_check
    _
  $region27: #{bert_forward.11} parent=0 // pred_check_branch
    %125 = sbr.rel (0) target = $region29
  $region28: #{bert_forward.11} parent=0 // pred_region
    _
  $region29: #{bert_forward.11} parent=0 // pred_fallthru
    _

// kernel: bert_forward.12
$region0: #{bert_forward.12}
  #allocation0 [shape = 'u32[]', space=smem, size = 0x4, offset = 0x4, fixed_abs, tag = 'smem constant byte address 0x4 - core index']
  #allocation1 [shape = 'u32[144,128]{1,0:T(1,128)}', space=vmem, size = 0x12000, scoped, tag = 'internal scratch']
  #allocation2 [shape = 'f32[16,96]{1,0:T(8,128)}', space=vmem, size = 0x2000, scoped, tag = 'scratch operand']
  #allocation3 [shape = 'bf16[16,32]{1,0:T(16,128)(2,1)}', space=vmem, size = 0x1000, scoped, tag = 'scratch operand']
  %s0 = inlined_call_operand.vmem [shape: bf16[16,32], index: 0, kind: input, shape index: {}]
  %s1 = inlined_call_operand.vmem [shape: f32[1,32], index: 1, kind: input, shape index: {}]
  %s2 = inlined_call_operand.vmem [shape: f32[1,32], index: 2, kind: input, shape index: {}]
  %s3 = inlined_call_operand.vmem [shape: bf16[32,96], index: 3, kind: input, shape index: {}]
  %s4 = inlined_call_operand.vmem [shape: f32[1,96], index: 4, kind: input, shape index: {}]
  %s5 = inlined_call_operand.vmem [shape: bf16[16,96], index: 5, kind: output, shape index: {}]
  %s6 = sld [smem:[#allocation0]]
  $region42: #{bert_forward.12} parent=0
    _
  %s8 = ssub.s32 1, %s6
  %s9 = scalar_select 0, %s8, %s6
  // Predicated region
  $region2: #{bert_forward.12} parent=0 // pred_check
    _
  $region3: #{bert_forward.12} parent=0 // pred_check_branch
    %11 = sbr.rel (0) target = $region5
  $region4: #{bert_forward.12} parent=0 // pred_region
    _
  $region5: #{bert_forward.12} parent=0 // pred_fallthru
    _
  // Predicated region
  $region6: #{bert_forward.12} parent=0 // pred_check
    _
  $region7: #{bert_forward.12} parent=0 // pred_check_branch
    %13 = sbr.rel (0) target = $region9
  $region8: #{bert_forward.12} parent=0 // pred_region
    _
  $region9: #{bert_forward.12} parent=0 // pred_fallthru
    _
  // Predicated region
  $region10: #{bert_forward.12} parent=0 // pred_check
    _
  $region11: #{bert_forward.12} parent=0 // pred_check_branch
    %15 = sbr.rel (0) target = $region13
  $region12: #{bert_forward.12} parent=0 // pred_region
    _
  $region13: #{bert_forward.12} parent=0 // pred_fallthru
    _
  // Predicated region
  $region14: #{bert_forward.12} parent=0 // pred_check
    _
  $region15: #{bert_forward.12} parent=0 // pred_check_branch
    %17 = sbr.rel (0) target = $region17
  $region16: #{bert_forward.12} parent=0 // pred_region
    _
  $region17: #{bert_forward.12} parent=0 // pred_fallthru
    _
  // Predicated region
  $region18: #{bert_forward.12} parent=0 // pred_check
    _
  $region19: #{bert_forward.12} parent=0 // pred_check_branch
    %19 = sbr.rel (0) target = $region21
  $region20: #{bert_forward.12} parent=0 // pred_region
    _
  $region21: #{bert_forward.12} parent=0 // pred_fallthru
    _
  %p21 = scmp.eq.s32.totalorder 0, 0
  // Predicated region
  $region22: #{bert_forward.12} parent=0 // pred_check
    %p22 = pneg %p21
  $region23: #{bert_forward.12} parent=0 // pred_check_branch
    %24 = sbr.rel (%p22) target = $region25
  $region24: #{bert_forward.12} parent=0 // pred_region
    %vm25 = vcmask 785408
    %26 = vst.msk [vmem:[#allocation2] sm:$0xff] %vm25, 0.0
    %27 = vst.msk [vmem:[#allocation2 + $0x8] sm:$0xff] %vm25, 0.0
  $region25: #{bert_forward.12} parent=0 // pred_fallthru
    _
  %p28 = scmp.eq.s32.totalorder 0, 0
  // Predicated region
  $region26: #{bert_forward.12} parent=0 // pred_check
    %p29 = pneg %p28
  $region27: #{bert_forward.12} parent=0 // pred_check_branch
    %31 = sbr.rel (%p29) target = $region29
  $region28: #{bert_forward.12} parent=0 // pred_region
    %v32 = vld [vmem:[%s0] sm:$0xf]
    %v33 = vld [vmem:[%s0 + $0x4] sm:$0xf]
    %v34 = vunpack.c.l.bf16 %v32
    %v35 = vunpack.c.l.bf16 %v33
    %vm36 = vcmask 261120
    %v37 = vsel %vm36, %v34, 0.0
    %38 = vadd.xlane.f32.xlu0 %v37
    %v39 = vpop.xlane.xlu0 %38
    %v40 = vsel %vm36, %v35, 0.0
    %41 = vadd.xlane.f32.xlu0 %v40
    %v42 = vpop.xlane.xlu0 %41
    %v43 = vrcp.pop 32.0
    %v44 = vmul.f32 %v39, %v43
    %v45 = vmul.f32 %v42, %v43
    %v46 = vsub.f32 %v34, %v44
    %v47 = vsub.f32 %v35, %v45
    %v48 = vmul.f32 %v46, %v46
    %v49 = vmul.f32 %v47, %v47
    %v50 = vsel %vm36, %v48, 0.0
    %51 = vadd.xlane.f32.xlu0 %v50
    %v52 = vpop.xlane.xlu0 %51
    %v53 = vsel %vm36, %v49, 0.0
    %54 = vadd.xlane.f32.xlu0 %v53
    %v55 = vpop.xlane.xlu0 %54
    %v56 = vmul.f32 %v52, %v43
    %v57 = vmul.f32 %v55, %v43
    %v58 = vadd.f32 %v56, 1e-06
    %v59 = vadd.f32 %v57, 1e-06
    %v60 = vrsqrt.pop %v58
    %v61 = vrsqrt.pop %v59
    %v62 = vmul.f32 %v46, %v60
    %v63 = vmul.f32 %v47, %v61
    %v64 = vld [vmem:[%s1] sm:$0x1]
    %v66 = vlaneseq
    %v67 = vshrl.u32 %v66, 7
    %v68 = vsub.s32 0, %v67
    %v69 = vrot.slane %v64, %v68
    %v71 = vmul.f32 %v62, %v69
    %v72 = vmul.f32 %v63, %v69
    %v73 = vld [vmem:[%s2] sm:$0x1]
    %v75 = vlaneseq
    %v76 = vshrl.u32 %v75, 7
    %v77 = vsub.s32 0, %v76
    %v78 = vrot.slane %v73, %v77
    %v80 = vadd.f32 %v71, %v78
    %v81 = vadd.f32 %v72, %v78
    %v82 = vpack.c.bf16 %v81, %v80
    %83 = vst.msk [vmem:[#allocation3] sm:$0xff] %vm36, %v82
  $region29: #{bert_forward.12} parent=0 // pred_fallthru
    _
  %v84 = vld [vmem:[#allocation3] sm:$0xff]
  %v85 = vld [vmem:[%s3] sm:$0xf]
  %v86 = vld [vmem:[%s3 + $0x4] sm:$0xf]
  %v87 = vld [vmem:[%s3 + $0x8] sm:$0xf]
  %v88 = vld [vmem:[%s3 + $0xc] sm:$0xf]
  %v89 = vld [vmem:[#allocation2] sm:$0xff]
  %v90 = vld [vmem:[#allocation2 + $0x8] sm:$0xff]
  %v95 = vunpack.c.l.b16 %v85
  %v96 = vunpack.c.l.b16 %v86
  %v97 = vunpack.c.l.b16 %v87
  %v98 = vunpack.c.l.b16 %v88
  %v99 = vpack.c.b16 %v96, %v95
  %v100 = vpack.c.b16 %v98, %v97
  %vm103 = vcmask 261120
  %v105 = vsel %vm103, %v84, 0
  %107 = vmatprep.subr.bf16.mxu0 0
  %108 = vmatpush1.bf16.msra.mxu0 %v99
  %109 = vmatprep.subr.bf16.mxu0 0
  %110 = vmatpush1.bf16.msra.mxu0 %v100
  %111 = vmatprep.subr.bf16.mxu0 0
  %112 = vmatpush1.bf16.msra.mxu0 0
  %113 = vmatprep.subr.bf16.mxu0 0
  %114 = vmatpush1.bf16.msra.mxu0 0
  %115 = vmatprep.subr.bf16.mxu0 0
  %116 = vmatpush1.bf16.msra.mxu0 0
  %117 = vmatprep.subr.bf16.mxu0 0
  %118 = vmatpush1.bf16.msra.mxu0 0
  %119 = vmatprep.subr.bf16.mxu0 0
  %120 = vmatpush1.bf16.msra.mxu0 0
  %121 = vmatprep.subr.bf16.mxu0 0
  %122 = vmatpush1.bf16.msra.mxu0 0
  %123 = vmatprep.subr.bf16.mxu0 0
  %124 = vmatpush1.bf16.msra.mxu0 0
  %125 = vmatprep.subr.bf16.mxu0 0
  %126 = vmatpush1.bf16.msra.mxu0 0
  %127 = vmatprep.subr.bf16.mxu0 0
  %128 = vmatpush1.bf16.msra.mxu0 0
  %129 = vmatprep.subr.bf16.mxu0 0
  %130 = vmatpush1.bf16.msra.mxu0 0
  %131 = vmatprep.subr.bf16.mxu0 0
  %132 = vmatpush1.bf16.msra.mxu0 0
  %133 = vmatprep.subr.bf16.mxu0 0
  %134 = vmatpush1.bf16.msra.mxu0 0
  %135 = vmatprep.subr.bf16.mxu0 0
  %136 = vmatpush1.bf16.msra.mxu0 0
  %137 = vmatprep.subr.bf16.mxu0 0
  %138 = vmatpush1.bf16.msra.mxu0 0
  %139 = vmatprep.mubr.bf16.mxu0 0
  %140 = vmatmul.mubr.bf16.gmra.mrb[0].mxu0 %v105
  %v141 = vpop.f32.mrb[0].mxu0
  %v142 = vadd.f32 0.0, %v141
  %v143 = vpop.f32.mrb[0].mxu0
  %v144 = vpop.f32.mrb[0].mxu0
  %v145 = vadd.f32 0.0, %v144
  %v146 = vpop.f32.mrb[0].mxu0
  %147 = vdwg.mxu0
  %v148 = vadd.f32 %v89, %v142
  %v149 = vadd.f32 %v90, %v145
  %vm150 = vcmask 785408
  %151 = vst.msk [vmem:[#allocation2] sm:$0xff] %vm150, %v148
  %152 = vst.msk [vmem:[#allocation2 + $0x8] sm:$0xff] %vm150, %v149
  // Predicated region
  $region30: #{bert_forward.12} parent=0 // pred_check
    %p153 = pneg %p21
  $region31: #{bert_forward.12} parent=0 // pred_check_branch
    %155 = sbr.rel (%p153) target = $region33
  $region32: #{bert_forward.12} parent=0 // pred_region
    %v156 = vld [vmem:[#allocation2] sm:$0xff]
    %v157 = vld [vmem:[#allocation2 + $0x8] sm:$0xff]
    %v158 = vld [vmem:[%s4] sm:$0x1]
    %v160 = vlaneseq
    %v161 = vshrl.u32 %v160, 7
    %v162 = vsub.s32 0, %v161
    %v163 = vrot.slane %v158, %v162
    %v165 = vadd.f32 %v156, %v163
    %v166 = vadd.f32 %v157, %v163
    %v167 = vpack.c.bf16 %v166, %v165
    %v169 = vunpack.c.l.b16 %v167
    %v170 = vunpack.c.h.b16 %v167
    %v171 = vpack.c.b16 %v169, %v169
    %v172 = vpack.c.b16 %v170, %v170
    %vm175 = vcmask 781312
    %176 = vst.msk [vmem:[%s5] sm:$0xf] %vm175, %v171
    %177 = vst.msk [vmem:[%s5 + $0x4] sm:$0xf] %vm175, %v172
  $region33: #{bert_forward.12} parent=0 // pred_fallthru
    _
  // Predicated region
  $region34: #{bert_forward.12} parent=0 // pred_check
    _
  $region35: #{bert_forward.12} parent=0 // pred_check_branch
    %179 = sbr.rel (0) target = $region37
  $region36: #{bert_forward.12} parent=0 // pred_region
    _
  $region37: #{bert_forward.12} parent=0 // pred_fallthru
    _
  // Predicated region
  $region38: #{bert_forward.12} parent=0 // pred_check
    _
  $region39: #{bert_forward.12} parent=0 // pred_check_branch
    %181 = sbr.rel (0) target = $region41
  $region40: #{bert_forward.12} parent=0 // pred_region
    _
  $region41: #{bert_forward.12} parent=0 // pred_fallthru
    _

// kernel: bert_forward.13
$region0: #{bert_forward.13}
  #allocation0 [shape = 'u32[]', space=smem, size = 0x4, offset = 0x4, fixed_abs, tag = 'smem constant byte address 0x4 - core index']
  #allocation1 [shape = 'u32[144,128]{1,0:T(1,128)}', space=vmem, size = 0x12000, scoped, tag = 'internal scratch']
  %s0 = inlined_call_operand.vmem [shape: bf16[16,96], index: 0, kind: input, shape index: {}]
  %s1 = inlined_call_operand.vmem [shape: bf16[16,32], index: 1, kind: input, shape index: {}]
  %s2 = inlined_call_operand.vmem [shape: f32[2,16], index: 2, kind: input, shape index: {}]
  %s3 = inlined_call_operand.vmem [shape: f32[2,16], index: 3, kind: input, shape index: {}]
  %s4 = inlined_call_operand.vmem [shape: f32[2,1,8], index: 4, kind: input, shape index: {}]
  %s5 = inlined_call_operand.vmem [shape: bf16[16,32], index: 5, kind: output, shape index: {}]
  %s6 = sld [smem:[#allocation0]]
  $region53: #{bert_forward.13} parent=0
    _
  %s8 = ssub.s32 1, %s6
  %s9 = scalar_select 0, %s8, %s6
  loop: start=0, step=1, limit=4
  $region2: #{bert_forward.13} parent=0 // loop_pre_header
    _
  $region3: #{bert_forward.13} parent=0 // loop_header
    %s11 = sphi 0, %s15
    %p12 = scmp.ge.s32.totalorder %s11, 4
    %s18 = sphi 0, %s30
    %s19 = sphi 0, %s26
    %s20 = sphi 0, %s18
    %s21 = sphi 0, %s19
    %s22 = sphi 0, %s20
    %s23 = sphi 0, %s21
    %s33 = sphi 0, %s35
    %s36 = sphi 0, %s33
    %s37 = sphi 0, %s36
    %s53 = sphi 0, %s37
    %s59 = sphi 0, %s61
    %s62 = sphi 0, %s59
    %s63 = sphi 0, %s62
    %s79 = sphi 0, %s63
    %s83 = sphi 0, %s83
    %s85 = sphi 0, %s83
    %s86 = sphi 0, %s85
    %s100 = sphi 0, %s86
    %s104 = sphi 0, %s104
    %s106 = sphi 0, %s104
    %s107 = sphi 0, %s106
    %s121 = sphi 0, %s107
    %s127 = sphi 0, %s129
    %s130 = sphi 0, %s127
    %s131 = sphi 0, %s130
    %s147 = sphi 0, %s131
    %s155 = sphi 0, %s157
    %s158 = sphi 0, %s155
    %s159 = sphi 0, %s158
    %s175 = sphi 0, %s159
  $region4: #{bert_forward.13} parent=0 // loop_header_branch
    %14 = sbr.rel (%p12) target = $region8
  $region5: #{bert_forward.13} parent=0 // loop_body
    %s16 = ssub.s32 %s11, 1
    %s17 = ssub.s32 %s11, 2
    %s24 = sadd.s32 1, %s19
    %p25 = scmp.ge.s32.totalorder %s24, 1
    %s26 = scalar_select %p25, 0, %s24
    %s27 = sadd.s32 1, %s18
    %s28 = scalar_select %p25, %s27, %s18
    %p29 = scmp.ge.s32.totalorder %s28, 2
    %s30 = scalar_select %p29, 0, %s28
    %s31 = ssub.s32 %s18, %s30
    %p32 = scmp.eq.s32.totalorder %s31, 0
    %s34 = sadd.s32 %s33, 1
    %s35 = scalar_select %p32, %s33, %s34
    %p38 = pneg %p32
    %p39 = scmp.eq.s32.totalorder %s11, 1
    %p40 = por %p38, %p39
    %p41 = scmp.ne.s32.totalorder %s33, %s36
    %p42 = scmp.eq.s32.totalorder %s11, 0
    %p43 = por %p41, %p42
    %p44 = scmp.ne.s32.totalorder %s33, %s36
    %p45 = scmp.eq.s32.totalorder %s16, 1
    %p46 = por %p44, %p45
    %p47 = scmp.ne.s32.totalorder %s36, %s37
    %p48 = scmp.eq.s32.totalorder %s16, 0
    %p49 = por %p47, %p48
    %p50 = scmp.ne.s32.totalorder %s36, %s37
    %p51 = scmp.eq.s32.totalorder %s17, 1
    %p52 = por %p50, %p51
    %p54 = scmp.ne.s32.totalorder %s37, %s53
    %p55 = scmp.eq.s32.totalorder %s17, 0
    %p56 = por %p54, %p55
    %s57 = ssub.s32 %s18, %s30
    %p58 = scmp.eq.s32.totalorder %s57, 0
    %s60 = sadd.s32 %s59, 1
    %s61 = scalar_select %p58, %s59, %s60
    %p64 = pneg %p58
    %p65 = scmp.eq.s32.totalorder %s11, 1
    %p66 = por %p64, %p65
    %p67 = scmp.ne.s32.totalorder %s59, %s62
    %p68 = scmp.eq.s32.totalorder %s11, 0
    %p69 = por %p67, %p68
    %p70 = scmp.ne.s32.totalorder %s59, %s62
    %p71 = scmp.eq.s32.totalorder %s16, 1
    %p72 = por %p70, %p71
    %p73 = scmp.ne.s32.totalorder %s62, %s63
    %p74 = scmp.eq.s32.totalorder %s16, 0
    %p75 = por %p73, %p74
    %p76 = scmp.ne.s32.totalorder %s62, %s63
    %p77 = scmp.eq.s32.totalorder %s17, 1
    %p78 = por %p76, %p77
    %p80 = scmp.ne.s32.totalorder %s63, %s79
    %p81 = scmp.eq.s32.totalorder %s17, 0
    %p82 = por %p80, %p81
    %s84 = sadd.s32 %s83, 1
    %p87 = scmp.eq.s32.totalorder %s11, 1
    %p88 = scmp.ne.s32.totalorder %s83, %s85
    %p89 = scmp.eq.s32.totalorder %s11, 0
    %p90 = por %p88, %p89
    %p91 = scmp.ne.s32.totalorder %s83, %s85
    %p92 = scmp.eq.s32.totalorder %s16, 1
    %p93 = por %p91, %p92
    %p94 = scmp.ne.s32.totalorder %s85, %s86
    %p95 = scmp.eq.s32.totalorder %s16, 0
    %p96 = por %p94, %p95
    %p97 = scmp.ne.s32.totalorder %s85, %s86
    %p98 = scmp.eq.s32.totalorder %s17, 1
    %p99 = por %p97, %p98
    %p101 = scmp.ne.s32.totalorder %s86, %s100
    %p102 = scmp.eq.s32.totalorder %s17, 0
    %p103 = por %p101, %p102
    %s105 = sadd.s32 %s104, 1
    %p108 = scmp.eq.s32.totalorder %s11, 1
    %p109 = scmp.ne.s32.totalorder %s104, %s106
    %p110 = scmp.eq.s32.totalorder %s11, 0
    %p111 = por %p109, %p110
    %p112 = scmp.ne.s32.totalorder %s104, %s106
    %p113 = scmp.eq.s32.totalorder %s16, 1
    %p114 = por %p112, %p113
    %p115 = scmp.ne.s32.totalorder %s106, %s107
    %p116 = scmp.eq.s32.totalorder %s16, 0
    %p117 = por %p115, %p116
    %p118 = scmp.ne.s32.totalorder %s106, %s107
    %p119 = scmp.eq.s32.totalorder %s17, 1
    %p120 = por %p118, %p119
    %p122 = scmp.ne.s32.totalorder %s107, %s121
    %p123 = scmp.eq.s32.totalorder %s17, 0
    %p124 = por %p122, %p123
    %s125 = ssub.s32 %s18, %s30
    %p126 = scmp.eq.s32.totalorder %s125, 0
    %s128 = sadd.s32 %s127, 1
    %s129 = scalar_select %p126, %s127, %s128
    %p132 = pneg %p126
    %p133 = scmp.eq.s32.totalorder %s11, 1
    %p134 = por %p132, %p133
    %p135 = scmp.ne.s32.totalorder %s127, %s130
    %p136 = scmp.eq.s32.totalorder %s11, 0
    %p137 = por %p135, %p136
    %p138 = scmp.ne.s32.totalorder %s127, %s130
    %p139 = scmp.eq.s32.totalorder %s16, 1
    %p140 = por %p138, %p139
    %p141 = scmp.ne.s32.totalorder %s130, %s131
    %p142 = scmp.eq.s32.totalorder %s16, 0
    %p143 = por %p141, %p142
    %p144 = scmp.ne.s32.totalorder %s130, %s131
    %p145 = scmp.eq.s32.totalorder %s17, 1
    %p146 = por %p144, %p145
    %p148 = scmp.ne.s32.totalorder %s131, %s147
    %p149 = scmp.eq.s32.totalorder %s17, 0
    %p150 = por %p148, %p149
    %s151 = sadd.s32 %s18, %s19
    %s152 = sadd.s32 %s30, %s26
    %s153 = ssub.s32 %s151, %s152
    %p154 = scmp.eq.s32.totalorder %s153, 0
    %s156 = sadd.s32 %s155, 1
    %s157 = scalar_select %p154, %s155, %s156
    %p160 = pneg %p154
    %p161 = scmp.eq.s32.totalorder %s11, 1
    %p162 = por %p160, %p161
    %p163 = scmp.ne.s32.totalorder %s155, %s158
    %p164 = scmp.eq.s32.totalorder %s11, 0
    %p165 = por %p163, %p164
    %p166 = scmp.ne.s32.totalorder %s155, %s158
    %p167 = scmp.eq.s32.totalorder %s16, 1
    %p168 = por %p166, %p167
    %p169 = scmp.ne.s32.totalorder %s158, %s159
    %p170 = scmp.eq.s32.totalorder %s16, 0
    %p171 = por %p169, %p170
    %p172 = scmp.ne.s32.totalorder %s158, %s159
    %p173 = scmp.eq.s32.totalorder %s17, 1
    %p174 = por %p172, %p173
    %p176 = scmp.ne.s32.totalorder %s159, %s175
    %p177 = scmp.eq.s32.totalorder %s17, 0
    %p178 = por %p176, %p177
    %p179 = scmp.le.s32.totalorder 1, %s11
    %p180 = scmp.lt.s32.totalorder %s11, 3
    %p181 = pnand %p179, %p180
    %p182 = pneg %p181
    // Predicated region
    $region9: #{bert_forward.13} parent=5 // pred_check
      _
    $region10: #{bert_forward.13} parent=5 // pred_check_branch
      %184 = sbr.rel (%p181) target = $region12
    $region11: #{bert_forward.13} parent=5 // pred_region
      %s185 = ssub.s32 %s11, 1
      // Predicated region
      $region13: #{bert_forward.13} parent=11 // pred_check
        %p186 = pneg %p96
      $region14: #{bert_forward.13} parent=11 // pred_check_branch
        %188 = sbr.rel (%p186) target = $region16
      $region15: #{bert_forward.13} parent=11 // pred_region
        _
      $region16: #{bert_forward.13} parent=11 // pred_fallthru
        _
      // Predicated region
      $region17: #{bert_forward.13} parent=11 // pred_check
        %p189 = pneg %p117
      $region18: #{bert_forward.13} parent=11 // pred_check_branch
        %191 = sbr.rel (%p189) target = $region20
      $region19: #{bert_forward.13} parent=11 // pred_region
        _
      $region20: #{bert_forward.13} parent=11 // pred_fallthru
        _
    $region12: #{bert_forward.13} parent=5 // pred_fallthru
      _
    %p192 = scmp.lt.s32.totalorder %s11, 2
    // Predicated region
    $region21: #{bert_forward.13} parent=5 // pred_check
      %p193 = pneg %p192
    $region22: #{bert_forward.13} parent=5 // pred_check_branch
      %195 = sbr.rel (%p193) target = $region24
    $region23: #{bert_forward.13} parent=5 // pred_region
      // Predicated region
      $region25: #{bert_forward.13} parent=23 // pred_check
        %p196 = pneg %p43
      $region26: #{bert_forward.13} parent=23 // pred_check_branch
        %198 = sbr.rel (%p196) target = $region28
      $region27: #{bert_forward.13} parent=23 // pred_region
        %p199 = scmp.lt.s32.totalorder %s18, 1
        %s200 = scalar_select %p199, %s18, 1
        %s201 = smul.addr %s200, 4
        %s202 = scalar_lea.vmem %s0, %s201
      $region28: #{bert_forward.13} parent=23 // pred_fallthru
        _
      // Predicated region
      $region29: #{bert_forward.13} parent=23 // pred_check
        %p203 = pneg %p69
      $region30: #{bert_forward.13} parent=23 // pred_check_branch
        %205 = sbr.rel (%p203) target = $region32
      $region31: #{bert_forward.13} parent=23 // pred_region
        %p206 = scmp.lt.s32.totalorder %s18, 1
        %s207 = scalar_select %p206, %s18, 1
        %s208 = smul.addr %s207, 4
        %s209 = scalar_lea.vmem %s1, %s208
      $region32: #{bert_forward.13} parent=23 // pred_fallthru
        _
      // Predicated region
      $region33: #{bert_forward.13} parent=23 // pred_check
        %p210 = pneg %p137
      $region34: #{bert_forward.13} parent=23 // pred_check_branch
        %212 = sbr.rel (%p210) target = $region36
      $region35: #{bert_forward.13} parent=23 // pred_region
        %p213 = scmp.lt.s32.totalorder %s18, 1
        %s214 = scalar_select %p213, %s18, 1
        %s215 = scalar_lea.vmem %s4, %s214
      $region36: #{bert_forward.13} parent=23 // pred_fallthru
        _
    $region24: #{bert_forward.13} parent=5 // pred_fallthru
      _
    %p216 = scmp.le.s32.totalorder 1, %s11
    %p217 = scmp.lt.s32.totalorder %s11, 3
    %p218 = pnand %p216, %p217
    %p219 = pneg %p218
    // Predicated region
    $region37: #{bert_forward.13} parent=5 // pred_check
      _
    $region38: #{bert_forward.13} parent=5 // pred_check_branch
      %221 = sbr.rel (%p218) target = $region40
    $region39: #{bert_forward.13} parent=5 // pred_region
      %s222 = ssub.s32 %s11, 1
      %p223 = scmp.lt.s32.totalorder %s20, 1
      %s224 = scalar_select %p223, %s20, 1
      %s225 = smul.addr %s224, 4
      %s226 = scalar_lea.vmem %s0, %s225
      %p227 = pneg %p49
      %p228 = pneg %p46
      %p229 = scmp.lt.s32.totalorder %s20, 1
      %s230 = scalar_select %p229, %s20, 1
      %s231 = smul.addr %s230, 4
      %s232 = scalar_lea.vmem %s1, %s231
      %p233 = pneg %p75
      %p234 = pneg %p72
      %p235 = pneg %p96
      %p236 = pneg %p93
      %p237 = pneg %p117
      %p238 = pneg %p114
      %p239 = scmp.lt.s32.totalorder %s20, 1
      %s240 = scalar_select %p239, %s20, 1
      %s241 = scalar_lea.vmem %s4, %s240
      %p242 = pneg %p143
      %p243 = pneg %p140
      %p244 = pneg %p171
      %p245 = pneg %p168
      %s246 = sadd.s32 %s20, %s21
      %p247 = scmp.lt.s32.totalorder %s246, 1
      %s248 = scalar_select %p247, %s246, 1
      %s249 = smul.addr %s248, 4
      %s250 = scalar_lea.vmem %s5, %s249
      %p251 = scmp.lt.s32.totalorder %s20, 1
      %s252 = scalar_select %p251, %s20, 1
      %s253 = smul.addr %s252, 4
      %s254 = scalar_lea.vmem %s0, %s253
      %p255 = scmp.lt.s32.totalorder %s20, 1
      %s256 = scalar_select %p255, %s20, 1
      %s257 = smul.addr %s256, 4
      %s258 = scalar_lea.vmem %s1, %s257
      %p259 = scmp.lt.s32.totalorder %s20, 1
      %s260 = scalar_select %p259, %s20, 1
      %s261 = scalar_lea.vmem %s4, %s260
      %s262 = sadd.s32 %s20, %s21
      %p263 = scmp.lt.s32.totalorder %s262, 1
      %s264 = scalar_select %p263, %s262, 1
      %s265 = smul.addr %s264, 4
      %s266 = scalar_lea.vmem %s5, %s265
      %s267 = sadd.s32 %s20, %s21
      %v269 = vld [vmem:[%s2] sm:$0x3]
      %v270 = vld [vmem:[%s3] sm:$0x3]
      %v271 = vsub.f32 %v270, %v269
      %v272 = vmul.f32 %v271, 0.25
      %v273 = vld [vmem:[%s261] sm:$0x1]
      %v274 = vld [vmem:[%s254] sm:$0xf]
      %v275 = vunpack.c.l.bf16 %v274
      %v276 = vld [vmem:[%s258] sm:$0xf]
      %v277 = vlaneseq
      %v278 = vshrl.u32 %v277, 7
      %v279 = vsub.s32 0, %v278
      %v280 = vrot.slane %v269, %v279
      %v281 = vadd.f32 %v275, %v280
      %v282 = vmul.f32 %v281, 0.25
      %v283 = vpack.c.bf16 %v282, %v282
      %285 = vrot.lane.b32.xlu0 %v276, 32
      %v286 = vpop.permute.xlu0 %285
      %v288 = vadd.bf16 %v274, %v286
      %v289 = vpack.c.bf16 %v272, %v272
      %vm290 = vcmask 130048
      %v292 = vsel %vm290, %v289, 0
      %v295 = vsel %vm290, %v276, 0
      %297 = vmatprep.subr.bf16.mxu0 0
      %298 = vmatpush1.bf16.xpose.msra.mxu0 %v295
      %299 = vmatprep.subr.bf16.mxu0 0
      %300 = vmatpush1.bf16.xpose.msra.mxu0 0
      %301 = vmatprep.subr.bf16.mxu0 0
      %302 = vmatpush1.bf16.xpose.msra.mxu0 0
      %303 = vmatprep.subr.bf16.mxu0 0
      %304 = vmatpush1.bf16.xpose.msra.mxu0 0
      %305 = vmatprep.subr.bf16.mxu0 0
      %306 = vmatpush1.bf16.xpose.msra.mxu0 0
      %307 = vmatprep.subr.bf16.mxu0 0
      %308 = vmatpush1.bf16.xpose.msra.mxu0 0
      %309 = vmatprep.subr.bf16.mxu0 0
      %310 = vmatpush1.bf16.xpose.msra.mxu0 0
      %311 = vmatprep.subr.bf16.mxu0 0
      %312 = vmatpush1.bf16.xpose.msra.mxu0 0
      %313 = vmatprep.subr.bf16.mxu0 0
      %314 = vmatpush1.bf16.xpose.msra.mxu0 0
      %315 = vmatprep.subr.bf16.mxu0 0
      %316 = vmatpush1.bf16.xpose.msra.mxu0 0
      %317 = vmatprep.subr.bf16.mxu0 0
      %318 = vmatpush1.bf16.xpose.msra.mxu0 0
      %319 = vmatprep.subr.bf16.mxu0 0
      %320 = vmatpush1.bf16.xpose.msra.mxu0 0
      %321 = vmatprep.subr.bf16.mxu0 0
      %322 = vmatpush1.bf16.xpose.msra.mxu0 0
      %323 = vmatprep.subr.bf16.mxu0 0
      %324 = vmatpush1.bf16.xpose.msra.mxu0 0
      %325 = vmatprep.subr.bf16.mxu0 0
      %326 = vmatpush1.bf16.xpose.msra.mxu0 0
      %327 = vmatprep.subr.bf16.mxu0 0
      %328 = vmatpush1.bf16.xpose.msra.mxu0 0
      %329 = vmatprep.mubr.bf16.mxu0 0
      %330 = vmatmul.mubr.bf16.gmra.mrb[0].mxu0 %v292
      %v331 = vpop.f32.mrb[0].mxu0
      %v332 = vadd.f32 0.0, %v331
      %v333 = vpop.f32.mrb[0].mxu0
      %v334 = vpop.f32.mrb[0].mxu0
      %v335 = vpop.f32.mrb[0].mxu0
      %336 = vdwg.mxu0
      %v337 = vlaneseq
      %v338 = vshrl.u32 %v337, 7
      %v339 = vsub.s32 0, %v338
      %v340 = vrot.slane %v332, %v339
      %v342 = vunpack.c.l.b16 %v288
      %v343 = vpack.c.b16 %v342, %v342
      %344 = vrot.lane.b32.xlu0 %v343, 96
      %v345 = vpop.permute.xlu0 %344
      %v347 = vsel %vm290, %v283, 0
      %v350 = vsel %vm290, %v345, 0
      %352 = vmatprep.subr.bf16.mxu0 0
      %353 = vmatpush1.bf16.xpose.msra.mxu0 %v350
      %354 = vmatprep.subr.bf16.mxu0 0
      %355 = vmatpush1.bf16.xpose.msra.mxu0 0
      %356 = vmatprep.subr.bf16.mxu0 0
      %357 = vmatpush1.bf16.xpose.msra.mxu0 0
      %358 = vmatprep.subr.bf16.mxu0 0
      %359 = vmatpush1.bf16.xpose.msra.mxu0 0
      %360 = vmatprep.subr.bf16.mxu0 0
      %361 = vmatpush1.bf16.xpose.msra.mxu0 0
      %362 = vmatprep.subr.bf16.mxu0 0
      %363 = vmatpush1.bf16.xpose.msra.mxu0 0
      %364 = vmatprep.subr.bf16.mxu0 0
      %365 = vmatpush1.bf16.xpose.msra.mxu0 0
      %366 = vmatprep.subr.bf16.mxu0 0
      %367 = vmatpush1.bf16.xpose.msra.mxu0 0
      %368 = vmatprep.subr.bf16.mxu0 0
      %369 = vmatpush1.bf16.xpose.msra.mxu0 0
      %370 = vmatprep.subr.bf16.mxu0 0
      %371 = vmatpush1.bf16.xpose.msra.mxu0 0
      %372 = vmatprep.subr.bf16.mxu0 0
      %373 = vmatpush1.bf16.xpose.msra.mxu0 0
      %374 = vmatprep.subr.bf16.mxu0 0
      %375 = vmatpush1.bf16.xpose.msra.mxu0 0
      %376 = vmatprep.subr.bf16.mxu0 0
      %377 = vmatpush1.bf16.xpose.msra.mxu0 0
      %378 = vmatprep.subr.bf16.mxu0 0
      %379 = vmatpush1.bf16.xpose.msra.mxu0 0
      %380 = vmatprep.subr.bf16.mxu0 0
      %381 = vmatpush1.bf16.xpose.msra.mxu0 0
      %382 = vmatprep.subr.bf16.mxu0 0
      %383 = vmatpush1.bf16.xpose.msra.mxu0 0
      %384 = vmatprep.mubr.bf16.mxu0 0
      %385 = vmatmul.mubr.bf16.gmra.mrb[0].mxu0 %v347
      %v386 = vpop.f32.mrb[0].mxu0
      %v387 = vadd.f32 %v340, %v386
      %v388 = vpop.f32.mrb[0].mxu0
      %v389 = vpop.f32.mrb[0].mxu0
      %v390 = vpop.f32.mrb[0].mxu0
      %391 = vdwg.mxu0
      %v393 = vlaneseq
      %v394 = vshrl.u32 %v393, 7
      %v395 = vsub.s32 0, %v394
      %v396 = vrot.slane %v273, %v395
      %v398 = vadd.f32 %v387, %v396
      %vm399 = vcmask 64512
      %v400 = vsel %vm399, %v398, -inf
      %401 = vmax.xlane.f32.xlu0 %v400
      %v402 = vpop.xlane.xlu0 %401
      %v403 = vsub.f32 %v398, %v402
      %v404 = vmul.f32 %v403, 1.442695
      %v405 = vpow.pop %v404
      %v406 = vsel %vm399, %v405, 0.0
      %407 = vadd.xlane.f32.xlu0 %v406
      %v408 = vpop.xlane.xlu0 %407
      %v409 = vrcp.pop %v408
      %v410 = vmul.f32 %v405, %v409
      %v411 = vpack.c.bf16 %v410, %v410
      %v413 = vunpack.c.l.b16 %v274
      %v414 = vpack.c.b16 %v413, %v413
      %415 = vrot.lane.b32.xlu0 %v414, 64
      %v416 = vpop.permute.xlu0 %415
      %v418 = vsel %vm399, %v411, 0
      %vm420 = vcmask 1043456
      %v422 = vsel %vm420, %v416, 0
      %424 = vmatprep.subr.bf16.mxu0 0
      %425 = vmatpush1.bf16.msra.mxu0 %v422
      %426 = vmatprep.subr.bf16.mxu0 0
      %427 = vmatpush1.bf16.msra.mxu0 0
      %428 = vmatprep.subr.bf16.mxu0 0
      %429 = vmatpush1.bf16.msra.mxu0 0
      %430 = vmatprep.subr.bf16.mxu0 0
      %431 = vmatpush1.bf16.msra.mxu0 0
      %432 = vmatprep.subr.bf16.mxu0 0
      %433 = vmatpush1.bf16.msra.mxu0 0
      %434 = vmatprep.subr.bf16.mxu0 0
      %435 = vmatpush1.bf16.msra.mxu0 0
      %436 = vmatprep.subr.bf16.mxu0 0
      %437 = vmatpush1.bf16.msra.mxu0 0
      %438 = vmatprep.subr.bf16.mxu0 0
      %439 = vmatpush1.bf16.msra.mxu0 0
      %440 = vmatprep.subr.bf16.mxu0 0
      %441 = vmatpush1.bf16.msra.mxu0 0
      %442 = vmatprep.subr.bf16.mxu0 0
      %443 = vmatpush1.bf16.msra.mxu0 0
      %444 = vmatprep.subr.bf16.mxu0 0
      %445 = vmatpush1.bf16.msra.mxu0 0
      %446 = vmatprep.subr.bf16.mxu0 0
      %447 = vmatpush1.bf16.msra.mxu0 0
      %448 = vmatprep.subr.bf16.mxu0 0
      %449 = vmatpush1.bf16.msra.mxu0 0
      %450 = vmatprep.subr.bf16.mxu0 0
      %451 = vmatpush1.bf16.msra.mxu0 0
      %452 = vmatprep.subr.bf16.mxu0 0
      %453 = vmatpush1.bf16.msra.mxu0 0
      %454 = vmatprep.subr.bf16.mxu0 0
      %455 = vmatpush1.bf16.msra.mxu0 0
      %456 = vmatprep.mubr.bf16.mxu0 0
      %457 = vmatmul.mubr.bf16.gmra.mrb[0].mxu0 %v418
      %v458 = vpop.f32.mrb[0].mxu0
      %v459 = vadd.f32 0.0, %v458
      %v460 = vpop.f32.mrb[0].mxu0
      %v461 = vpop.f32.mrb[0].mxu0
      %v462 = vpop.f32.mrb[0].mxu0
      %463 = vdwg.mxu0
      %v464 = vpack.c.bf16 %v459, %v459
      %vm465 = vcmask 125952
      %466 = vst.msk [vmem:[%s266] sm:$0xf] %vm465, %v464
      %v467 = vld [vmem:[%s254] sm:$0xf]
      %v468 = vunpack.c.l.bf16 %v467
      %v469 = vld [vmem:[%s258] sm:$0xf]
      %v470 = vlaneseq
      %v471 = vshrl.u32 %v470, 7
      %v472 = vsub.s32 1, %v471
      %v473 = vrot.slane %v269, %v472
      %475 = vrot.lane.b32.xlu0 %v473, 16
      %v476 = vpop.permute.xlu0 %475
      %v478 = vadd.f32 %v468, %v476
      %v479 = vmul.f32 %v478, 0.25
      %v480 = vpack.c.bf16 %v479, %v479
      %482 = vrot.lane.b32.xlu0 %v469, 32
      %v483 = vpop.permute.xlu0 %482
      %v485 = vadd.bf16 %v467, %v483
      %v486 = vshrl.u32 %v289, 16
      %v488 = vunpack.c.l.b16 %v469
      %v489 = vpack.c.b16 %v488, %v488
      %490 = vrot.lane.b32.xlu0 %v489, 112
      %v491 = vpop.permute.xlu0 %490
      %v493 = vsel %vm290, %v486, 0
      %v496 = vsel %vm290, %v491, 0
      %498 = vmatprep.subr.bf16.mxu0 0
      %499 = vmatpush1.bf16.xpose.msra.mxu0 %v496
      %500 = vmatprep.subr.bf16.mxu0 0
      %501 = vmatpush1.bf16.xpose.msra.mxu0 0
      %502 = vmatprep.subr.bf16.mxu0 0
      %503 = vmatpush1.bf16.xpose.msra.mxu0 0
      %504 = vmatprep.subr.bf16.mxu0 0
      %505 = vmatpush1.bf16.xpose.msra.mxu0 0
      %506 = vmatprep.subr.bf16.mxu0 0
      %507 = vmatpush1.bf16.xpose.msra.mxu0 0
      %508 = vmatprep.subr.bf16.mxu0 0
      %509 = vmatpush1.bf16.xpose.msra.mxu0 0
      %510 = vmatprep.subr.bf16.mxu0 0
      %511 = vmatpush1.bf16.xpose.msra.mxu0 0
      %512 = vmatprep.subr.bf16.mxu0 0
      %513 = vmatpush1.bf16.xpose.msra.mxu0 0
      %514 = vmatprep.subr.bf16.mxu0 0
      %515 = vmatpush1.bf16.xpose.msra.mxu0 0
      %516 = vmatprep.subr.bf16.mxu0 0
      %517 = vmatpush1.bf16.xpose.msra.mxu0 0
      %518 = vmatprep.subr.bf16.mxu0 0
      %519 = vmatpush1.bf16.xpose.msra.mxu0 0
      %520 = vmatprep.subr.bf16.mxu0 0
      %521 = vmatpush1.bf16.xpose.msra.mxu0 0
      %522 = vmatprep.subr.bf16.mxu0 0
      %523 = vmatpush1.bf16.xpose.msra.mxu0 0
      %524 = vmatprep.subr.bf16.mxu0 0
      %525 = vmatpush1.bf16.xpose.msra.mxu0 0
      %526 = vmatprep.subr.bf16.mxu0 0
      %527 = vmatpush1.bf16.xpose.msra.mxu0 0
      %528 = vmatprep.subr.bf16.mxu0 0
      %529 = vmatpush1.bf16.xpose.msra.mxu0 0
      %530 = vmatprep.mubr.bf16.mxu0 0
      %531 = vmatmul.mubr.bf16.gmra.mrb[0].mxu0 %v493
      %v532 = vpop.f32.mrb[0].mxu0
      %v533 = vadd.f32 0.0, %v532
      %v534 = vpop.f32.mrb[0].mxu0
      %v535 = vpop.f32.mrb[0].mxu0
      %v536 = vpop.f32.mrb[0].mxu0
      %537 = vdwg.mxu0
      %v538 = vlaneseq
      %v539 = vshrl.u32 %v538, 7
      %v540 = vsub.s32 0, %v539
      %v541 = vrot.slane %v533, %v540
      %543 = vrot.lane.b32.xlu0 %v480, 112
      %v544 = vpop.permute.xlu0 %543
      %v546 = vunpack.c.l.b16 %v485
      %v547 = vpack.c.b16 %v546, %v546
      %548 = vrot.lane.b32.xlu0 %v547, 80
      %v549 = vpop.permute.xlu0 %548
      %v551 = vsel %vm290, %v544, 0
      %v554 = vsel %vm290, %v549, 0
      %556 = vmatprep.subr.bf16.mxu0 0
      %557 = vmatpush1.bf16.xpose.msra.mxu0 %v554
      %558 = vmatprep.subr.bf16.mxu0 0
      %559 = vmatpush1.bf16.xpose.msra.mxu0 0
      %560 = vmatprep.subr.bf16.mxu0 0
      %561 = vmatpush1.bf16.xpose.msra.mxu0 0
      %562 = vmatprep.subr.bf16.mxu0 0
      %563 = vmatpush1.bf16.xpose.msra.mxu0 0
      %564 = vmatprep.subr.bf16.mxu0 0
      %565 = vmatpush1.bf16.xpose.msra.mxu0 0
      %566 = vmatprep.subr.bf16.mxu0 0
      %567 = vmatpush1.bf16.xpose.msra.mxu0 0
      %568 = vmatprep.subr.bf16.mxu0 0
      %569 = vmatpush1.bf16.xpose.msra.mxu0 0
      %570 = vmatprep.subr.bf16.mxu0 0
      %571 = vmatpush1.bf16.xpose.msra.mxu0 0
      %572 = vmatprep.subr.bf16.mxu0 0
      %573 = vmatpush1.bf16.xpose.msra.mxu0 0
      %574 = vmatprep.subr.bf16.mxu0 0
      %575 = vmatpush1.bf16.xpose.msra.mxu0 0
      %576 = vmatprep.subr.bf16.mxu0 0
      %577 = vmatpush1.bf16.xpose.msra.mxu0 0
      %578 = vmatprep.subr.bf16.mxu0 0
      %579 = vmatpush1.bf16.xpose.msra.mxu0 0
      %580 = vmatprep.subr.bf16.mxu0 0
      %581 = vmatpush1.bf16.xpose.msra.mxu0 0
      %582 = vmatprep.subr.bf16.mxu0 0
      %583 = vmatpush1.bf16.xpose.msra.mxu0 0
      %584 = vmatprep.subr.bf16.mxu0 0
      %585 = vmatpush1.bf16.xpose.msra.mxu0 0
      %586 = vmatprep.subr.bf16.mxu0 0
      %587 = vmatpush1.bf16.xpose.msra.mxu0 0
      %588 = vmatprep.mubr.bf16.mxu0 0
      %589 = vmatmul.mubr.bf16.gmra.mrb[0].mxu0 %v551
      %v590 = vpop.f32.mrb[0].mxu0
      %v591 = vadd.f32 %v541, %v590
      %v592 = vpop.f32.mrb[0].mxu0
      %v593 = vpop.f32.mrb[0].mxu0
      %v594 = vpop.f32.mrb[0].mxu0
      %595 = vdwg.mxu0
      %v596 = vadd.f32 %v591, %v396
      %v597 = vsel %vm399, %v596, -inf
      %598 = vmax.xlane.f32.xlu0 %v597
      %v599 = vpop.xlane.xlu0 %598
      %v600 = vsub.f32 %v596, %v599
      %v601 = vmul.f32 %v600, 1.442695
      %v602 = vpow.pop %v601
      %v603 = vsel %vm399, %v602, 0.0
      %604 = vadd.xlane.f32.xlu0 %v603
      %v605 = vpop.xlane.xlu0 %604
      %v606 = vrcp.pop %v605
      %v607 = vmul.f32 %v602, %v606
      %v608 = vpack.c.bf16 %v607, %v607
      %v610 = vunpack.c.l.b16 %v467
      %v611 = vpack.c.b16 %v610, %v610
      %612 = vrot.lane.b32.xlu0 %v611, 48
      %v613 = vpop.permute.xlu0 %612
      %v615 = vsel %vm399, %v608, 0
      %v618 = vsel %vm420, %v613, 0
      %620 = vmatprep.subr.bf16.mxu0 0
      %621 = vmatpush1.bf16.msra.mxu0 %v618
      %622 = vmatprep.subr.bf16.mxu0 0
      %623 = vmatpush1.bf16.msra.mxu0 0
      %624 = vmatprep.subr.bf16.mxu0 0
      %625 = vmatpush1.bf16.msra.mxu0 0
      %626 = vmatprep.subr.bf16.mxu0 0
      %627 = vmatpush1.bf16.msra.mxu0 0
      %628 = vmatprep.subr.bf16.mxu0 0
      %629 = vmatpush1.bf16.msra.mxu0 0
      %630 = vmatprep.subr.bf16.mxu0 0
      %631 = vmatpush1.bf16.msra.mxu0 0
      %632 = vmatprep.subr.bf16.mxu0 0
      %633 = vmatpush1.bf16.msra.mxu0 0
      %634 = vmatprep.subr.bf16.mxu0 0
      %635 = vmatpush1.bf16.msra.mxu0 0
      %636 = vmatprep.subr.bf16.mxu0 0
      %637 = vmatpush1.bf16.msra.mxu0 0
      %638 = vmatprep.subr.bf16.mxu0 0
      %639 = vmatpush1.bf16.msra.mxu0 0
      %640 = vmatprep.subr.bf16.mxu0 0
      %641 = vmatpush1.bf16.msra.mxu0 0
      %642 = vmatprep.subr.bf16.mxu0 0
      %643 = vmatpush1.bf16.msra.mxu0 0
      %644 = vmatprep.subr.bf16.mxu0 0
      %645 = vmatpush1.bf16.msra.mxu0 0
      %646 = vmatprep.subr.bf16.mxu0 0
      %647 = vmatpush1.bf16.msra.mxu0 0
      %648 = vmatprep.subr.bf16.mxu0 0
      %649 = vmatpush1.bf16.msra.mxu0 0
      %650 = vmatprep.subr.bf16.mxu0 0
      %651 = vmatpush1.bf16.msra.mxu0 0
      %652 = vmatprep.mubr.bf16.mxu0 0
      %653 = vmatmul.mubr.bf16.gmra.mrb[0].mxu0 %v615
      %v654 = vpop.f32.mrb[0].mxu0
      %v655 = vadd.f32 0.0, %v654
      %v656 = vpop.f32.mrb[0].mxu0
      %v657 = vpop.f32.mrb[0].mxu0
      %v658 = vpop.f32.mrb[0].mxu0
      %659 = vdwg.mxu0
      %v660 = vpack.c.bf16 %v655, %v655
      %v662 = vunpack.c.l.b16 %v660
      %v663 = vpack.c.b16 %v662, %v662
      %664 = vrot.lane.b32.xlu0 %v663, 16
      %v665 = vpop.permute.xlu0 %664
      %vm667 = vcmask 257152
      %668 = vst.msk [vmem:[%s266] sm:$0xf] %vm667, %v665
      %s669 = sadd.s32 %s20, %s21
      %p670 = scmp.lt.s32.totalorder %s669, 1
      %s671 = scalar_select %p670, %s669, 1
      %s672 = smul.addr %s671, 4
      %s673 = scalar_lea.vmem %s5, %s672
      // Predicated region
      $region41: #{bert_forward.13} parent=39 // pred_check
        %p674 = pneg %p168
      $region42: #{bert_forward.13} parent=39 // pred_check_branch
        %676 = sbr.rel (%p674) target = $region44
      $region43: #{bert_forward.13} parent=39 // pred_region
        %s677 = sadd.s32 %s20, %s21
      $region44: #{bert_forward.13} parent=39 // pred_fallthru
        _
    $region40: #{bert_forward.13} parent=5 // pred_fallthru
      _
    %p678 = scmp.le.s32.totalorder 2, %s11
    // Predicated region
    $region45: #{bert_forward.13} parent=5 // pred_check
      %p679 = pneg %p678
    $region46: #{bert_forward.13} parent=5 // pred_check_branch
      %681 = sbr.rel (%p679) target = $region48
    $region47: #{bert_forward.13} parent=5 // pred_region
      %s682 = ssub.s32 %s11, 2
      // Predicated region
      $region49: #{bert_forward.13} parent=47 // pred_check
        %p683 = pneg %p174
      $region50: #{bert_forward.13} parent=47 // pred_check_branch
        %685 = sbr.rel (%p683) target = $region52
      $region51: #{bert_forward.13} parent=47 // pred_region
        %s686 = sadd.s32 %s22, %s23
        %p687 = scmp.lt.s32.totalorder %s686, 1
        %s688 = scalar_select %p687, %s686, 1
        %s689 = smul.addr %s688, 4
        %s690 = scalar_lea.vmem %s5, %s689
      $region52: #{bert_forward.13} parent=47 // pred_fallthru
        _
    $region48: #{bert_forward.13} parent=5 // pred_fallthru
      _
  $region6: #{bert_forward.13} parent=0 // loop_footer
    %s15 = sadd.s32 1, %s11
  $region7: #{bert_forward.13} parent=0 // loop_footer_branch
    %10 = sbr.rel target = $region3
  $region8: #{bert_forward.13} parent=0 // loop_exit
    _

// kernel: bert_forward.15
$region0: #{bert_forward.15}
  #allocation0 [shape = 'u32[]', space=smem, size = 0x4, offset = 0x4, fixed_abs, tag = 'smem constant byte address 0x4 - core index']
  #allocation1 [shape = 'u32[144,128]{1,0:T(1,128)}', space=vmem, size = 0x12000, scoped, tag = 'internal scratch']
  #allocation2 [shape = 'f32[16,128]{1,0:T(8,128)}', space=vmem, size = 0x2000, scoped, tag = 'scratch operand']
  #allocation3 [shape = 'bf16[16,32]{1,0:T(16,128)(2,1)}', space=vmem, size = 0x1000, scoped, tag = 'scratch operand']
  %s0 = inlined_call_operand.vmem [shape: bf16[16,32], index: 0, kind: input, shape index: {}]
  %s1 = inlined_call_operand.vmem [shape: f32[1,32], index: 1, kind: input, shape index: {}]
  %s2 = inlined_call_operand.vmem [shape: f32[1,32], index: 2, kind: input, shape index: {}]
  %s3 = inlined_call_operand.vmem [shape: bf16[32,128], index: 3, kind: input, shape index: {}]
  %s4 = inlined_call_operand.vmem [shape: f32[1,128], index: 4, kind: input, shape index: {}]
  %s5 = inlined_call_operand.vmem [shape: bf16[16,128], index: 5, kind: output, shape index: {}]
  %s6 = sld [smem:[#allocation0]]
  $region42: #{bert_forward.15} parent=0
    _
  %s8 = ssub.s32 1, %s6
  %s9 = scalar_select 0, %s8, %s6
  // Predicated region
  $region2: #{bert_forward.15} parent=0 // pred_check
    _
  $region3: #{bert_forward.15} parent=0 // pred_check_branch
    %11 = sbr.rel (0) target = $region5
  $region4: #{bert_forward.15} parent=0 // pred_region
    _
  $region5: #{bert_forward.15} parent=0 // pred_fallthru
    _
  // Predicated region
  $region6: #{bert_forward.15} parent=0 // pred_check
    _
  $region7: #{bert_forward.15} parent=0 // pred_check_branch
    %13 = sbr.rel (0) target = $region9
  $region8: #{bert_forward.15} parent=0 // pred_region
    _
  $region9: #{bert_forward.15} parent=0 // pred_fallthru
    _
  // Predicated region
  $region10: #{bert_forward.15} parent=0 // pred_check
    _
  $region11: #{bert_forward.15} parent=0 // pred_check_branch
    %15 = sbr.rel (0) target = $region13
  $region12: #{bert_forward.15} parent=0 // pred_region
    _
  $region13: #{bert_forward.15} parent=0 // pred_fallthru
    _
  // Predicated region
  $region14: #{bert_forward.15} parent=0 // pred_check
    _
  $region15: #{bert_forward.15} parent=0 // pred_check_branch
    %17 = sbr.rel (0) target = $region17
  $region16: #{bert_forward.15} parent=0 // pred_region
    _
  $region17: #{bert_forward.15} parent=0 // pred_fallthru
    _
  // Predicated region
  $region18: #{bert_forward.15} parent=0 // pred_check
    _
  $region19: #{bert_forward.15} parent=0 // pred_check_branch
    %19 = sbr.rel (0) target = $region21
  $region20: #{bert_forward.15} parent=0 // pred_region
    _
  $region21: #{bert_forward.15} parent=0 // pred_fallthru
    _
  %p21 = scmp.eq.s32.totalorder 0, 0
  // Predicated region
  $region22: #{bert_forward.15} parent=0 // pred_check
    %p22 = pneg %p21
  $region23: #{bert_forward.15} parent=0 // pred_check_branch
    %24 = sbr.rel (%p22) target = $region25
  $region24: #{bert_forward.15} parent=0 // pred_region
    %25 = vst [vmem:[#allocation2] sm:$0xff] 0.0
    %26 = vst [vmem:[#allocation2 + $0x8] sm:$0xff] 0.0
  $region25: #{bert_forward.15} parent=0 // pred_fallthru
    _
  %p27 = scmp.eq.s32.totalorder 0, 0
  // Predicated region
  $region26: #{bert_forward.15} parent=0 // pred_check
    %p28 = pneg %p27
  $region27: #{bert_forward.15} parent=0 // pred_check_branch
    %30 = sbr.rel (%p28) target = $region29
  $region28: #{bert_forward.15} parent=0 // pred_region
    %v31 = vld [vmem:[%s0] sm:$0xf]
    %v32 = vld [vmem:[%s0 + $0x4] sm:$0xf]
    %v33 = vunpack.c.l.bf16 %v31
    %v34 = vunpack.c.l.bf16 %v32
    %vm35 = vcmask 261120
    %v36 = vsel %vm35, %v33, 0.0
    %37 = vadd.xlane.f32.xlu0 %v36
    %v38 = vpop.xlane.xlu0 %37
    %v39 = vsel %vm35, %v34, 0.0
    %40 = vadd.xlane.f32.xlu0 %v39
    %v41 = vpop.xlane.xlu0 %40
    %v42 = vrcp.pop 32.0
    %v43 = vmul.f32 %v38, %v42
    %v44 = vmul.f32 %v41, %v42
    %v45 = vsub.f32 %v33, %v43
    %v46 = vsub.f32 %v34, %v44
    %v47 = vmul.f32 %v45, %v45
    %v48 = vmul.f32 %v46, %v46
    %v49 = vsel %vm35, %v47, 0.0
    %50 = vadd.xlane.f32.xlu0 %v49
    %v51 = vpop.xlane.xlu0 %50
    %v52 = vsel %vm35, %v48, 0.0
    %53 = vadd.xlane.f32.xlu0 %v52
    %v54 = vpop.xlane.xlu0 %53
    %v55 = vmul.f32 %v51, %v42
    %v56 = vmul.f32 %v54, %v42
    %v57 = vadd.f32 %v55, 1e-06
    %v58 = vadd.f32 %v56, 1e-06
    %v59 = vrsqrt.pop %v57
    %v60 = vrsqrt.pop %v58
    %v61 = vmul.f32 %v45, %v59
    %v62 = vmul.f32 %v46, %v60
    %v63 = vld [vmem:[%s1] sm:$0x1]
    %v65 = vlaneseq
    %v66 = vshrl.u32 %v65, 7
    %v67 = vsub.s32 0, %v66
    %v68 = vrot.slane %v63, %v67
    %v70 = vmul.f32 %v61, %v68
    %v71 = vmul.f32 %v62, %v68
    %v72 = vld [vmem:[%s2] sm:$0x1]
    %v74 = vlaneseq
    %v75 = vshrl.u32 %v74, 7
    %v76 = vsub.s32 0, %v75
    %v77 = vrot.slane %v72, %v76
    %v79 = vadd.f32 %v70, %v77
    %v80 = vadd.f32 %v71, %v77
    %v81 = vpack.c.bf16 %v80, %v79
    %82 = vst.msk [vmem:[#allocation3] sm:$0xff] %vm35, %v81
  $region29: #{bert_forward.15} parent=0 // pred_fallthru
    _
  %v83 = vld [vmem:[#allocation3] sm:$0xff]
  %v84 = vld [vmem:[%s3] sm:$0xf]
  %v85 = vld [vmem:[%s3 + $0x4] sm:$0xf]
  %v86 = vld [vmem:[%s3 + $0x8] sm:$0xf]
  %v87 = vld [vmem:[%s3 + $0xc] sm:$0xf]
  %v88 = vld [vmem:[#allocation2] sm:$0xff]
  %v89 = vld [vmem:[#allocation2 + $0x8] sm:$0xff]
  %v94 = vunpack.c.l.b16 %v84
  %v95 = vunpack.c.l.b16 %v85
  %v96 = vunpack.c.l.b16 %v86
  %v97 = vunpack.c.l.b16 %v87
  %v98 = vpack.c.b16 %v95, %v94
  %v99 = vpack.c.b16 %v97, %v96
  %vm102 = vcmask 261120
  %v104 = vsel %vm102, %v83, 0
  %106 = vmatprep.subr.bf16.mxu0 0
  %107 = vmatpush1.bf16.msra.mxu0 %v98
  %108 = vmatprep.subr.bf16.mxu0 0
  %109 = vmatpush1.bf16.msra.mxu0 %v99
  %110 = vmatprep.subr.bf16.mxu0 0
  %111 = vmatpush1.bf16.msra.mxu0 0
  %112 = vmatprep.subr.bf16.mxu0 0
  %113 = vmatpush1.bf16.msra.mxu0 0
  %114 = vmatprep.subr.bf16.mxu0 0
  %115 = vmatpush1.bf16.msra.mxu0 0
  %116 = vmatprep.subr.bf16.mxu0 0
  %117 = vmatpush1.bf16.msra.mxu0 0
  %118 = vmatprep.subr.bf16.mxu0 0
  %119 = vmatpush1.bf16.msra.mxu0 0
  %120 = vmatprep.subr.bf16.mxu0 0
  %121 = vmatpush1.bf16.msra.mxu0 0
  %122 = vmatprep.subr.bf16.mxu0 0
  %123 = vmatpush1.bf16.msra.mxu0 0
  %124 = vmatprep.subr.bf16.mxu0 0
  %125 = vmatpush1.bf16.msra.mxu0 0
  %126 = vmatprep.subr.bf16.mxu0 0
  %127 = vmatpush1.bf16.msra.mxu0 0
  %128 = vmatprep.subr.bf16.mxu0 0
  %129 = vmatpush1.bf16.msra.mxu0 0
  %130 = vmatprep.subr.bf16.mxu0 0
  %131 = vmatpush1.bf16.msra.mxu0 0
  %132 = vmatprep.subr.bf16.mxu0 0
  %133 = vmatpush1.bf16.msra.mxu0 0
  %134 = vmatprep.subr.bf16.mxu0 0
  %135 = vmatpush1.bf16.msra.mxu0 0
  %136 = vmatprep.subr.bf16.mxu0 0
  %137 = vmatpush1.bf16.msra.mxu0 0
  %138 = vmatprep.mubr.bf16.mxu0 0
  %139 = vmatmul.mubr.bf16.gmra.mrb[0].mxu0 %v104
  %v140 = vpop.f32.mrb[0].mxu0
  %v141 = vadd.f32 0.0, %v140
  %v142 = vpop.f32.mrb[0].mxu0
  %v143 = vpop.f32.mrb[0].mxu0
  %v144 = vadd.f32 0.0, %v143
  %v145 = vpop.f32.mrb[0].mxu0
  %146 = vdwg.mxu0
  %v147 = vadd.f32 %v88, %v141
  %v148 = vadd.f32 %v89, %v144
  %149 = vst [vmem:[#allocation2] sm:$0xff] %v147
  %150 = vst [vmem:[#allocation2 + $0x8] sm:$0xff] %v148
  // Predicated region
  $region30: #{bert_forward.15} parent=0 // pred_check
    %p151 = pneg %p21
  $region31: #{bert_forward.15} parent=0 // pred_check_branch
    %153 = sbr.rel (%p151) target = $region33
  $region32: #{bert_forward.15} parent=0 // pred_region
    %v154 = vld [vmem:[#allocation2] sm:$0xff]
    %v155 = vld [vmem:[#allocation2 + $0x8] sm:$0xff]
    %v156 = vld [vmem:[%s4] sm:$0x1]
    %v158 = vlaneseq
    %v159 = vshrl.u32 %v158, 7
    %v160 = vsub.s32 0, %v159
    %v161 = vrot.slane %v156, %v160
    %v163 = vadd.f32 %v154, %v161
    %v164 = vadd.f32 %v155, %v161
    %v165 = vmul.f32 %v163, 0.5
    %v166 = vmul.f32 %v164, 0.5
    %v167 = vmul.f32 %v163, 0.044715
    %v168 = vmul.f32 %v164, 0.044715
    %v169 = vmul.f32 %v167, %v163
    %v170 = vmul.f32 %v168, %v164
    %v171 = vmul.f32 %v169, %v163
    %v172 = vmul.f32 %v170, %v164
    %v173 = vadd.f32 %v163, %v171
    %v174 = vadd.f32 %v164, %v172
    %v175 = vmul.f32 %v173, 0.7978846
    %v176 = vmul.f32 %v174, 0.7978846
    %v177 = vtanh.pop %v175
    %v178 = vtanh.pop %v176
    %v179 = vadd.f32 %v177, 1.0
    %v180 = vadd.f32 %v178, 1.0
    %v181 = vmul.f32 %v165, %v179
    %v182 = vmul.f32 %v166, %v180
    %v183 = vpack.c.bf16 %v182, %v181
    %v185 = vunpack.c.l.b16 %v183
    %v186 = vunpack.c.h.b16 %v183
    %v187 = vpack.c.b16 %v185, %v185
    %v188 = vpack.c.b16 %v186, %v186
    %191 = vst [vmem:[%s5] sm:$0xf] %v187
    %192 = vst [vmem:[%s5 + $0x4] sm:$0xf] %v188
  $region33: #{bert_forward.15} parent=0 // pred_fallthru
    _
  // Predicated region
  $region34: #{bert_forward.15} parent=0 // pred_check
    _
  $region35: #{bert_forward.15} parent=0 // pred_check_branch
    %194 = sbr.rel (0) target = $region37
  $region36: #{bert_forward.15} parent=0 // pred_region
    _
  $region37: #{bert_forward.15} parent=0 // pred_fallthru
    _
  // Predicated region
  $region38: #{bert_forward.15} parent=0 // pred_check
    _
  $region39: #{bert_forward.15} parent=0 // pred_check_branch
    %196 = sbr.rel (0) target = $region41
  $region40: #{bert_forward.15} parent=0 // pred_region
    _
  $region41: #{bert_forward.15} parent=0 // pred_fallthru
    _

// kernel: bert_forward.16
$region0: #{bert_forward.16}
  #allocation0 [shape = 'u32[]', space=smem, size = 0x4, offset = 0x4, fixed_abs, tag = 'smem constant byte address 0x4 - core index']
  #allocation1 [shape = 'u32[144,128]{1,0:T(1,128)}', space=vmem, size = 0x12000, scoped, tag = 'internal scratch']
  #allocation2 [shape = 'f32[16,32]{1,0:T(8,128)}', space=vmem, size = 0x2000, scoped, tag = 'scratch operand']
  %s0 = inlined_call_operand.vmem [shape: bf16[16,128], index: 0, kind: input, shape index: {}]
  %s1 = inlined_call_operand.vmem [shape: bf16[128,32], index: 1, kind: input, shape index: {}]
  %s2 = inlined_call_operand.vmem [shape: f32[1,32], index: 2, kind: input, shape index: {}]
  %s3 = inlined_call_operand.vmem [shape: bf16[16,32], index: 3, kind: input, shape index: {}]
  %s4 = inlined_call_operand.vmem [shape: bf16[16,32], index: 4, kind: output, shape index: {}]
  %s5 = sld [smem:[#allocation0]]
  $region34: #{bert_forward.16} parent=0
    _
  %s7 = ssub.s32 1, %s5
  %s8 = scalar_select 0, %s7, %s5
  // Predicated region
  $region2: #{bert_forward.16} parent=0 // pred_check
    _
  $region3: #{bert_forward.16} parent=0 // pred_check_branch
    %10 = sbr.rel (0) target = $region5
  $region4: #{bert_forward.16} parent=0 // pred_region
    _
  $region5: #{bert_forward.16} parent=0 // pred_fallthru
    _
  // Predicated region
  $region6: #{bert_forward.16} parent=0 // pred_check
    _
  $region7: #{bert_forward.16} parent=0 // pred_check_branch
    %12 = sbr.rel (0) target = $region9
  $region8: #{bert_forward.16} parent=0 // pred_region
    _
  $region9: #{bert_forward.16} parent=0 // pred_fallthru
    _
  // Predicated region
  $region10: #{bert_forward.16} parent=0 // pred_check
    _
  $region11: #{bert_forward.16} parent=0 // pred_check_branch
    %14 = sbr.rel (0) target = $region13
  $region12: #{bert_forward.16} parent=0 // pred_region
    _
  $region13: #{bert_forward.16} parent=0 // pred_fallthru
    _
  // Predicated region
  $region14: #{bert_forward.16} parent=0 // pred_check
    _
  $region15: #{bert_forward.16} parent=0 // pred_check_branch
    %16 = sbr.rel (0) target = $region17
  $region16: #{bert_forward.16} parent=0 // pred_region
    _
  $region17: #{bert_forward.16} parent=0 // pred_fallthru
    _
  %p18 = scmp.eq.s32.totalorder 0, 0
  // Predicated region
  $region18: #{bert_forward.16} parent=0 // pred_check
    %p19 = pneg %p18
  $region19: #{bert_forward.16} parent=0 // pred_check_branch
    %21 = sbr.rel (%p19) target = $region21
  $region20: #{bert_forward.16} parent=0 // pred_region
    %vm22 = vcmask 261120
    %23 = vst.msk [vmem:[#allocation2] sm:$0xff] %vm22, 0.0
    %24 = vst.msk [vmem:[#allocation2 + $0x8] sm:$0xff] %vm22, 0.0
  $region21: #{bert_forward.16} parent=0 // pred_fallthru
    _
  %v25 = vld [vmem:[%s0] sm:$0xf]
  %v26 = vld [vmem:[%s0 + $0x4] sm:$0xf]
  %v27 = vld [vmem:[%s1] sm:$0xf]
  %v28 = vld [vmem:[%s1 + $0x4] sm:$0xf]
  %v29 = vld [vmem:[%s1 + $0x8] sm:$0xf]
  %v30 = vld [vmem:[%s1 + $0xc] sm:$0xf]
  %v31 = vld [vmem:[%s1 + $0x10] sm:$0xf]
  %v32 = vld [vmem:[%s1 + $0x14] sm:$0xf]
  %v33 = vld [vmem:[%s1 + $0x18] sm:$0xf]
  %v34 = vld [vmem:[%s1 + $0x1c] sm:$0xf]
  %v35 = vld [vmem:[%s1 + $0x20] sm:$0xf]
  %v36 = vld [vmem:[%s1 + $0x24] sm:$0xf]
  %v37 = vld [vmem:[%s1 + $0x28] sm:$0xf]
  %v38 = vld [vmem:[%s1 + $0x2c] sm:$0xf]
  %v39 = vld [vmem:[%s1 + $0x30] sm:$0xf]
  %v40 = vld [vmem:[%s1 + $0x34] sm:$0xf]
  %v41 = vld [vmem:[%s1 + $0x38] sm:$0xf]
  %v42 = vld [vmem:[%s1 + $0x3c] sm:$0xf]
  %v43 = vld [vmem:[#allocation2] sm:$0xff]
  %v44 = vld [vmem:[#allocation2 + $0x8] sm:$0xff]
  %v47 = vunpack.c.l.b16 %v25
  %v48 = vunpack.c.l.b16 %v26
  %v49 = vpack.c.b16 %v48, %v47
  %v67 = vunpack.c.l.b16 %v27
  %v68 = vunpack.c.l.b16 %v28
  %v69 = vunpack.c.l.b16 %v29
  %v70 = vunpack.c.l.b16 %v30
  %v71 = vunpack.c.l.b16 %v31
  %v72 = vunpack.c.l.b16 %v32
  %v73 = vunpack.c.l.b16 %v33
  %v74 = vunpack.c.l.b16 %v34
  %v75 = vunpack.c.l.b16 %v35
  %v76 = vunpack.c.l.b16 %v36
  %v77 = vunpack.c.l.b16 %v37
  %v78 = vunpack.c.l.b16 %v38
  %v79 = vunpack.c.l.b16 %v39
  %v80 = vunpack.c.l.b16 %v40
  %v81 = vunpack.c.l.b16 %v41
  %v82 = vunpack.c.l.b16 %v42
  %v83 = vpack.c.b16 %v68, %v67
  %v84 = vpack.c.b16 %v70, %v69
  %v85 = vpack.c.b16 %v72, %v71
  %v86 = vpack.c.b16 %v74, %v73
  %v87 = vpack.c.b16 %v76, %v75
  %v88 = vpack.c.b16 %v78, %v77
  %v89 = vpack.c.b16 %v80, %v79
  %v90 = vpack.c.b16 %v82, %v81
  %99 = vmatprep.subr.bf16.mxu0 0
  %100 = vmatpush1.bf16.msra.mxu0 %v83
  %101 = vmatprep.subr.bf16.mxu0 0
  %102 = vmatpush1.bf16.msra.mxu0 %v84
  %103 = vmatprep.subr.bf16.mxu0 0
  %104 = vmatpush1.bf16.msra.mxu0 %v85
  %105 = vmatprep.subr.bf16.mxu0 0
  %106 = vmatpush1.bf16.msra.mxu0 %v86
  %107 = vmatprep.subr.bf16.mxu0 0
  %108 = vmatpush1.bf16.msra.mxu0 %v87
  %109 = vmatprep.subr.bf16.mxu0 0
  %110 = vmatpush1.bf16.msra.mxu0 %v88
  %111 = vmatprep.subr.bf16.mxu0 0
  %112 = vmatpush1.bf16.msra.mxu0 %v89
  %113 = vmatprep.subr.bf16.mxu0 0
  %114 = vmatpush1.bf16.msra.mxu0 %v90
  %115 = vmatprep.subr.bf16.mxu0 0
  %116 = vmatpush1.bf16.msra.mxu0 0
  %117 = vmatprep.subr.bf16.mxu0 0
  %118 = vmatpush1.bf16.msra.mxu0 0
  %119 = vmatprep.subr.bf16.mxu0 0
  %120 = vmatpush1.bf16.msra.mxu0 0
  %121 = vmatprep.subr.bf16.mxu0 0
  %122 = vmatpush1.bf16.msra.mxu0 0
  %123 = vmatprep.subr.bf16.mxu0 0
  %124 = vmatpush1.bf16.msra.mxu0 0
  %125 = vmatprep.subr.bf16.mxu0 0
  %126 = vmatpush1.bf16.msra.mxu0 0
  %127 = vmatprep.subr.bf16.mxu0 0
  %128 = vmatpush1.bf16.msra.mxu0 0
  %129 = vmatprep.subr.bf16.mxu0 0
  %130 = vmatpush1.bf16.msra.mxu0 0
  %131 = vmatprep.mubr.bf16.mxu0 0
  %132 = vmatmul.mubr.bf16.gmra.mrb[0].mxu0 %v49
  %v133 = vpop.f32.mrb[0].mxu0
  %v134 = vadd.f32 0.0, %v133
  %v135 = vpop.f32.mrb[0].mxu0
  %v136 = vpop.f32.mrb[0].mxu0
  %v137 = vadd.f32 0.0, %v136
  %v138 = vpop.f32.mrb[0].mxu0
  %139 = vdwg.mxu0
  %v140 = vadd.f32 %v43, %v134
  %v141 = vadd.f32 %v44, %v137
  %vm142 = vcmask 261120
  %143 = vst.msk [vmem:[#allocation2] sm:$0xff] %vm142, %v140
  %144 = vst.msk [vmem:[#allocation2 + $0x8] sm:$0xff] %vm142, %v141
  // Predicated region
  $region22: #{bert_forward.16} parent=0 // pred_check
    %p145 = pneg %p18
  $region23: #{bert_forward.16} parent=0 // pred_check_branch
    %147 = sbr.rel (%p145) target = $region25
  $region24: #{bert_forward.16} parent=0 // pred_region
    %v148 = vld [vmem:[#allocation2] sm:$0xff]
    %v149 = vld [vmem:[#allocation2 + $0x8] sm:$0xff]
    %v150 = vld [vmem:[%s2] sm:$0x1]
    %v152 = vlaneseq
    %v153 = vshrl.u32 %v152, 7
    %v154 = vsub.s32 0, %v153
    %v155 = vrot.slane %v150, %v154
    %v157 = vadd.f32 %v148, %v155
    %v158 = vadd.f32 %v149, %v155
    %v159 = vld [vmem:[%s3] sm:$0xf]
    %v160 = vld [vmem:[%s3 + $0x4] sm:$0xf]
    %v161 = vunpack.c.l.bf16 %v159
    %v162 = vunpack.c.l.bf16 %v160
    %v163 = vadd.f32 %v157, %v161
    %v164 = vadd.f32 %v158, %v162
    %v165 = vpack.c.bf16 %v164, %v163
    %v167 = vunpack.c.l.b16 %v165
    %v168 = vunpack.c.h.b16 %v165
    %v169 = vpack.c.b16 %v167, %v167
    %v170 = vpack.c.b16 %v168, %v168
    %vm173 = vcmask 257024
    %174 = vst.msk [vmem:[%s4] sm:$0xf] %vm173, %v169
    %175 = vst.msk [vmem:[%s4 + $0x4] sm:$0xf] %vm173, %v170
  $region25: #{bert_forward.16} parent=0 // pred_fallthru
    _
  // Predicated region
  $region26: #{bert_forward.16} parent=0 // pred_check
    _
  $region27: #{bert_forward.16} parent=0 // pred_check_branch
    %177 = sbr.rel (0) target = $region29
  $region28: #{bert_forward.16} parent=0 // pred_region
    _
  $region29: #{bert_forward.16} parent=0 // pred_fallthru
    _
  // Predicated region
  $region30: #{bert_forward.16} parent=0 // pred_check
    _
  $region31: #{bert_forward.16} parent=0 // pred_check_branch
    %179 = sbr.rel (0) target = $region33
  $region32: #{bert_forward.16} parent=0 // pred_region
    _
  $region33: #{bert_forward.16} parent=0 // pred_fallthru
    _

</llo_original>
